<compile_context>
chip_gen: v7x
topology: tpu7x:2x2x1
jax: 0.10.0
libtpu: 0.0.40
codegen_flags: <defaults>
</compile_context>

<pallas_src>
import functools

import numpy as np
import jax
import jax.numpy as jnp
from jax import lax
from jax.experimental import pallas as pl
from jax.experimental.pallas import tpu as pltpu

# ----------------------------- model config ---------------------------------
IN_CH = 3
C1, C2, C3 = 8, 16, 32
IMG = 32                       # 32 -> 16 -> 8 -> 4 -> (4x4 valid conv) -> 1
H1 = W1 = 16
H2 = W2 = 8
H3 = W3 = 4
NEG_SLOPE = 0.2


# ----------------------------- Pallas kernel ---------------------------------
def _leaky(v):
    return jnp.where(v >= 0.0, v, NEG_SLOPE * v)


def _stable_sigmoid(x):
    # Branch-stable sigmoid: never overflows exp() for the selected branch.
    pos = 1.0 / (1.0 + jnp.exp(-x))
    ex = jnp.exp(x)
    neg = ex / (1.0 + ex)
    return jnp.where(x >= 0.0, pos, neg)


def _backup_gan_kernel(p1_ref, w1_ref, b1_ref,
                       g2_ref, w2_ref, b2_ref,
                       g3_ref, w3_ref, b3_ref,
                       w4_ref, b4_ref, o_ref):
    """One image per grid step; every contraction hits the MXU."""
    f32 = jnp.float32

    # conv1: im2col (built in wrapper) matmul + bias + LeakyReLU
    #   [256, 27] @ [27, 8] -> a1 [256, 8]   (row = oh*16+ow, lane = c1)
    a1 = _leaky(jnp.dot(p1_ref[...], w1_ref[...], preferred_element_type=f32)
                + b1_ref[...])

    # conv2 (3x3, stride 2, pad 1): one stacked gather matmul + one fused
    # weight matmul with K = 9*C1 = 72.
    rows2 = jnp.dot(g2_ref[...], a1, preferred_element_type=f32)       # [576, 8]
    p2 = jnp.concatenate(
        [rows2[t * H2 * W2:(t + 1) * H2 * W2, :] for t in range(9)], axis=1)  # [64, 72]
    a2 = _leaky(jnp.dot(p2, w2_ref[...], preferred_element_type=f32)
                + b2_ref[...])                                          # [64, 16]

    # conv3: same structure, K = 9*C2 = 144.
    rows3 = jnp.dot(g3_ref[...], a2, preferred_element_type=f32)       # [144, 16]
    p3 = jnp.concatenate(
        [rows3[t * H3 * W3:(t + 1) * H3 * W3, :] for t in range(9)], axis=1)  # [16, 144]
    a3 = _leaky(jnp.dot(p3, w3_ref[...], preferred_element_type=f32)
                + b3_ref[...])                                          # [16, 32]

    # conv4 (4x4 valid conv == full per-image contraction) + stable sigmoid.
    # Lane reduction folded into a matmul against ones((32,1)).
    prod = a3 * w4_ref[...]                                             # [16, 32]
    col = jnp.dot(prod, jnp.ones((C3, 1), f32),
                  preferred_element_type=f32)                           # [16, 1]
    logit = jnp.sum(col, keepdims=True) + b4_ref[...]                   # [1, 1]
    sig = _stable_sigmoid(logit)

    # Lane-dense (8,128) output tile (unmasked store); scalar broadcast.
    o_ref[...] = jnp.broadcast_to(sig, (8, 128)).astype(o_ref.dtype)


# --------------------- per-image constant gather matrices --------------------
@functools.lru_cache(maxsize=None)
def _gather_constants():
    """Stacked 0/1 gather matrices for the stride-2 3x3 convs (per image)."""
    def stacked(hin, win, hout, wout):
        g = np.zeros((9 * hout * wout, hin * win), np.float32)
        for dy in range(3):
            for dx in range(3):
                t = dy * 3 + dx
                for oh in range(hout):
                    for ow in range(wout):
                        ih = 2 * oh + dy - 1
                        iw = 2 * ow + dx - 1
                        if 0 <= ih < hin and 0 <= iw < win:
                            g[t * hout * wout + oh * wout + ow, ih * win + iw] = 1.0
        return g

    g2 = stacked(H1, W1, H2, W2)        # [576, 256]  (~0.56 MiB, batch-independent)
    g3 = stacked(H2, W2, H3, W3)        # [144, 64]   (~36 KiB)
    return g2, g3


# ----------------------------- parameter init --------------------------------
def init_params(key):
    """Matches BackupGAN._initialize_weights: weight ~ N(0, 0.02), bias = 0.5."""
    k1, k2, k3, k4 = jax.random.split(key, 4)

    def w(k, shape):
        return (0.02 * jax.random.normal(k, shape)).astype(jnp.float32)

    return {
        "w1": w(k1, (C1, IN_CH, 3, 3)), "b1": jnp.full((C1,), 0.5, jnp.float32),
        "w2": w(k2, (C2, C1, 3, 3)),    "b2": jnp.full((C2,), 0.5, jnp.float32),
        "w3": w(k3, (C3, C2, 3, 3)),    "b3": jnp.full((C3,), 0.5, jnp.float32),
        "w4": w(k4, (1, C3, 4, 4)),     "b4": jnp.full((1,), 0.5, jnp.float32),
    }


# ----------------------------- forward pass ----------------------------------
@jax.jit
def backup_gan_forward(x, params):
    """x: [B, 3, 32, 32] (NCHW, PyTorch layout) -> [B] sigmoid scores."""
    B = x.shape[0]
    assert x.shape[1:] == (IN_CH, IMG, IMG), x.shape

    # ---- layout glue (XLA): NCHW -> NHWC, pad, im2col for conv1 only ----
    xh = jnp.transpose(x, (0, 2, 3, 1))                       # [B, 32, 32, 3]
    xp = jnp.pad(xh, ((0, 0), (1, 1), (1, 1), (0, 0)))        # [B, 34, 34, 3]
    taps = [xp[:, dy:dy + 2 * H1:2, dx:dx + 2 * W1:2, :]      # each [B, 16, 16, 3]
            for dy in range(3) for dx in range(3)]
    p1 = jnp.stack(taps, axis=3).reshape(B * H1 * W1, 9 * IN_CH)   # [B*256, 27]

    # ---- weights reshaped to fused-matmul form (tap-major K) ----
    w1m = jnp.transpose(params["w1"], (2, 3, 1, 0)).reshape(9 * IN_CH, C1)  # [27, 8]
    w2f = jnp.transpose(params["w2"], (2, 3, 1, 0)).reshape(9 * C1, C2)     # [72, 16]
    w3f = jnp.transpose(params["w3"], (2, 3, 1, 0)).reshape(9 * C2, C3)     # [144, 32]
    w4r = jnp.transpose(params["w4"][0], (1, 2, 0)).reshape(H3 * W3, C3)    # [16, 32]

    b1r = params["b1"].reshape(1, C1)
    b2r = params["b2"].reshape(1, C2)
    b3r = params["b3"].reshape(1, C3)
    b4r = params["b4"].reshape(1, 1)

    g2_np, g3_np = _gather_constants()
    g2, g3 = jnp.asarray(g2_np), jnp.asarray(g3_np)

    args = (p1, w1m, b1r, g2, w2f, b2r, g3, w3f, b3r, w4r, b4r)

    full = pl.BlockSpec  # shorthand below

    out = pl.pallas_call(
        _backup_gan_kernel,
        out_shape=jax.ShapeDtypeStruct((B * 8, 128), jnp.float32),
        grid=(B,),
        in_specs=[
            full((H1 * W1, 9 * IN_CH), lambda b: (b, 0)),   # p1: per-image block
            full(w1m.shape, lambda b: (0, 0)),
            full(b1r.shape, lambda b: (0, 0)),
            full(g2.shape,  lambda b: (0, 0)),              # constant block -> DMA once
            full(w2f.shape, lambda b: (0, 0)),
            full(b2r.shape, lambda b: (0, 0)),
            full(g3.shape,  lambda b: (0, 0)),
            full(w3f.shape, lambda b: (0, 0)),
            full(b3r.shape, lambda b: (0, 0)),
            full(w4r.shape, lambda b: (0, 0)),
            full(b4r.shape, lambda b: (0, 0)),
        ],
        out_specs=pl.BlockSpec((8, 128), lambda b: (b, 0)),
        compiler_params=pltpu.CompilerParams(
            dimension_semantics=("parallel",)),              # both TCs on v7x
    )(*args)

    # Each image wrote its score broadcast over an (8,128) tile; pick [0,0].
    return out.reshape(B, 8, 128)[:, 0, 0]                   # matches .view(-1)


# ----------------------------- pure-JAX reference -----------------------------
def _reference_forward(x, params):
    def conv(h, w, b, stride, pad):
        y = lax.conv_general_dilated(
            h, w, (stride, stride), [(pad, pad), (pad, pad)],
            dimension_numbers=("NCHW", "OIHW", "NCHW"))
        return y + b.reshape(1, -1, 1, 1)

    def leaky(v):
        return jnp.where(v >= 0.0, v, NEG_SLOPE * v)

    h = leaky(conv(x, params["w1"], params["b1"], 2, 1))
    h = leaky(conv(h, params["w2"], params["b2"], 2, 1))
    h = leaky(conv(h, params["w3"], params["b3"], 2, 1))
    h = conv(h, params["w4"], params["b4"], 1, 0)
    return jax.nn.sigmoid(h).reshape(-1)


# ----------------------------- main -------------------------------------------
if __name__ == "__main__":
    key = jax.random.PRNGKey(0)
    k_x, k_p = jax.random.split(key)

    # PyTorch-style NCHW input (32x32 so the final 4x4 valid conv yields 1x1)
    x = jax.random.normal(k_x, (2, IN_CH, IMG, IMG), dtype=jnp.float32)
    params = init_params(k_p)

    out = backup_gan_forward(x, params)
    out = jax.block_until_ready(out)
    ref = jax.block_until_ready(_reference_forward(x, params))

    assert out.shape == (2,), out.shape
    assert out.dtype == jnp.float32
    assert bool(jnp.all(jnp.isfinite(out)))
    assert bool(jnp.all((out > 0.0) & (out < 1.0)))
    assert bool(jnp.allclose(out, ref, atol=1e-4, rtol=1e-4)), (out, ref)
    print("KERNEL_OK")
</pallas_src>

<mosaic_0001>
module attributes {stable_mosaic.version = 11 : i64} {
  func.func @_backup_gan_kernel(%arg0: i32, %arg1: memref<256x27xf32, #tpu.memory_space<vmem>>, %arg2: memref<27x8xf32, #tpu.memory_space<vmem>>, %arg3: memref<1x8xf32, #tpu.memory_space<vmem>>, %arg4: memref<576x256xf32, #tpu.memory_space<vmem>>, %arg5: memref<72x16xf32, #tpu.memory_space<vmem>>, %arg6: memref<1x16xf32, #tpu.memory_space<vmem>>, %arg7: memref<144x64xf32, #tpu.memory_space<vmem>>, %arg8: memref<144x32xf32, #tpu.memory_space<vmem>>, %arg9: memref<1x32xf32, #tpu.memory_space<vmem>>, %arg10: memref<16x32xf32, #tpu.memory_space<vmem>>, %arg11: memref<1x1xf32, #tpu.memory_space<vmem>>, %arg12: memref<8x128xf32, #tpu.memory_space<vmem>>) attributes {dimension_semantics = [#tpu.dimension_semantics<parallel>], iteration_bounds = array<i64: 2>, scalar_prefetch = 0 : i64, scratch_operands = 0 : i64, tpu.core_type = #tpu.core_type<tc>, window_params = [{transform_indices = @transform_0, window_bounds = array<i64: 256, 27>}, {pipeline_mode = #tpu.pipeline_mode<synchronous>, transform_indices = @transform_1, window_bounds = array<i64: 27, 8>}, {pipeline_mode = #tpu.pipeline_mode<synchronous>, transform_indices = @transform_2, window_bounds = array<i64: 1, 8>}, {pipeline_mode = #tpu.pipeline_mode<synchronous>, transform_indices = @transform_3, window_bounds = array<i64: 576, 256>}, {pipeline_mode = #tpu.pipeline_mode<synchronous>, transform_indices = @transform_4, window_bounds = array<i64: 72, 16>}, {pipeline_mode = #tpu.pipeline_mode<synchronous>, transform_indices = @transform_5, window_bounds = array<i64: 1, 16>}, {pipeline_mode = #tpu.pipeline_mode<synchronous>, transform_indices = @transform_6, window_bounds = array<i64: 144, 64>}, {pipeline_mode = #tpu.pipeline_mode<synchronous>, transform_indices = @transform_7, window_bounds = array<i64: 144, 32>}, {pipeline_mode = #tpu.pipeline_mode<synchronous>, transform_indices = @transform_8, window_bounds = array<i64: 1, 32>}, {pipeline_mode = #tpu.pipeline_mode<synchronous>, transform_indices = @transform_9, window_bounds = array<i64: 16, 32>}, {pipeline_mode = #tpu.pipeline_mode<synchronous>, transform_indices = @transform_10, window_bounds = array<i64: 1, 1>}, {transform_indices = @transform_11, window_bounds = array<i64: 8, 128>}]} {
    %c0 = arith.constant 0 : index
    %c0_0 = arith.constant 0 : index
    %0 = vector.load %arg1[%c0, %c0_0] : memref<256x27xf32, #tpu.memory_space<vmem>>, vector<256x27xf32>
    %c0_1 = arith.constant 0 : index
    %c0_2 = arith.constant 0 : index
    %1 = vector.load %arg2[%c0_1, %c0_2] : memref<27x8xf32, #tpu.memory_space<vmem>>, vector<27x8xf32>
    %cst = arith.constant dense<0.000000e+00> : vector<256x8xf32>
    %2 = tpu.matmul %0, %1, %cst {dimension_numbers = #tpu.dot_dimension_numbers<[1], [0], [0], [1], [0, 0, 1, 1], [], []>} : vector<256x27xf32>, vector<27x8xf32>, vector<256x8xf32> -> vector<256x8xf32>
    %c0_3 = arith.constant 0 : index
    %c0_4 = arith.constant 0 : index
    %3 = vector.load %arg3[%c0_3, %c0_4] : memref<1x8xf32, #tpu.memory_space<vmem>>, vector<1x8xf32>
    %4 = vector.broadcast %3 : vector<1x8xf32> to vector<256x8xf32>
    %5 = arith.addf %2, %4 : vector<256x8xf32>
    %cst_5 = arith.constant 0.000000e+00 : f32
    %6 = vector.broadcast %cst_5 : f32 to vector<256x8xf32>
    %7 = arith.cmpf oge, %5, %6 : vector<256x8xf32>
    %cst_6 = arith.constant 2.000000e-01 : f32
    %8 = vector.broadcast %cst_6 : f32 to vector<256x8xf32>
    %9 = arith.mulf %8, %5 : vector<256x8xf32>
    %10 = arith.select %7, %5, %9 : vector<256x8xi1>, vector<256x8xf32>
    %c0_7 = arith.constant 0 : index
    %c0_8 = arith.constant 0 : index
    %11 = vector.load %arg4[%c0_7, %c0_8] : memref<576x256xf32, #tpu.memory_space<vmem>>, vector<576x256xf32>
    %cst_9 = arith.constant dense<0.000000e+00> : vector<576x8xf32>
    %12 = tpu.matmul %11, %10, %cst_9 {dimension_numbers = #tpu.dot_dimension_numbers<[1], [0], [0], [1], [0, 0, 1, 1], [], []>} : vector<576x256xf32>, vector<256x8xf32>, vector<576x8xf32> -> vector<576x8xf32>
    %13 = vector.extract_strided_slice %12 {offsets = [0, 0], sizes = [64, 8], strides = [1, 1]} : vector<576x8xf32> to vector<64x8xf32>
    %14 = vector.extract_strided_slice %12 {offsets = [64, 0], sizes = [64, 8], strides = [1, 1]} : vector<576x8xf32> to vector<64x8xf32>
    %15 = vector.extract_strided_slice %12 {offsets = [128, 0], sizes = [64, 8], strides = [1, 1]} : vector<576x8xf32> to vector<64x8xf32>
    %16 = vector.extract_strided_slice %12 {offsets = [192, 0], sizes = [64, 8], strides = [1, 1]} : vector<576x8xf32> to vector<64x8xf32>
    %17 = vector.extract_strided_slice %12 {offsets = [256, 0], sizes = [64, 8], strides = [1, 1]} : vector<576x8xf32> to vector<64x8xf32>
    %18 = vector.extract_strided_slice %12 {offsets = [320, 0], sizes = [64, 8], strides = [1, 1]} : vector<576x8xf32> to vector<64x8xf32>
    %19 = vector.extract_strided_slice %12 {offsets = [384, 0], sizes = [64, 8], strides = [1, 1]} : vector<576x8xf32> to vector<64x8xf32>
    %20 = vector.extract_strided_slice %12 {offsets = [448, 0], sizes = [64, 8], strides = [1, 1]} : vector<576x8xf32> to vector<64x8xf32>
    %21 = vector.extract_strided_slice %12 {offsets = [512, 0], sizes = [64, 8], strides = [1, 1]} : vector<576x8xf32> to vector<64x8xf32>
    %22 = tpu.concatenate %13, %14, %15, %16, %17, %18, %19, %20, %21 in 1 : vector<64x8xf32>, vector<64x8xf32>, vector<64x8xf32>, vector<64x8xf32>, vector<64x8xf32>, vector<64x8xf32>, vector<64x8xf32>, vector<64x8xf32>, vector<64x8xf32> -> vector<64x72xf32>
    %c0_10 = arith.constant 0 : index
    %c0_11 = arith.constant 0 : index
    %23 = vector.load %arg5[%c0_10, %c0_11] : memref<72x16xf32, #tpu.memory_space<vmem>>, vector<72x16xf32>
    %cst_12 = arith.constant dense<0.000000e+00> : vector<64x16xf32>
    %24 = tpu.matmul %22, %23, %cst_12 {dimension_numbers = #tpu.dot_dimension_numbers<[1], [0], [0], [1], [0, 0, 1, 1], [], []>} : vector<64x72xf32>, vector<72x16xf32>, vector<64x16xf32> -> vector<64x16xf32>
    %c0_13 = arith.constant 0 : index
    %c0_14 = arith.constant 0 : index
    %25 = vector.load %arg6[%c0_13, %c0_14] : memref<1x16xf32, #tpu.memory_space<vmem>>, vector<1x16xf32>
    %26 = vector.broadcast %25 : vector<1x16xf32> to vector<64x16xf32>
    %27 = arith.addf %24, %26 : vector<64x16xf32>
    %cst_15 = arith.constant 0.000000e+00 : f32
    %28 = vector.broadcast %cst_15 : f32 to vector<64x16xf32>
    %29 = arith.cmpf oge, %27, %28 : vector<64x16xf32>
    %cst_16 = arith.constant 2.000000e-01 : f32
    %30 = vector.broadcast %cst_16 : f32 to vector<64x16xf32>
    %31 = arith.mulf %30, %27 : vector<64x16xf32>
    %32 = arith.select %29, %27, %31 : vector<64x16xi1>, vector<64x16xf32>
    %c0_17 = arith.constant 0 : index
    %c0_18 = arith.constant 0 : index
    %33 = vector.load %arg7[%c0_17, %c0_18] : memref<144x64xf32, #tpu.memory_space<vmem>>, vector<144x64xf32>
    %cst_19 = arith.constant dense<0.000000e+00> : vector<144x16xf32>
    %34 = tpu.matmul %33, %32, %cst_19 {dimension_numbers = #tpu.dot_dimension_numbers<[1], [0], [0], [1], [0, 0, 1, 1], [], []>} : vector<144x64xf32>, vector<64x16xf32>, vector<144x16xf32> -> vector<144x16xf32>
    %35 = vector.extract_strided_slice %34 {offsets = [0, 0], sizes = [16, 16], strides = [1, 1]} : vector<144x16xf32> to vector<16x16xf32>
    %36 = vector.extract_strided_slice %34 {offsets = [16, 0], sizes = [16, 16], strides = [1, 1]} : vector<144x16xf32> to vector<16x16xf32>
    %37 = vector.extract_strided_slice %34 {offsets = [32, 0], sizes = [16, 16], strides = [1, 1]} : vector<144x16xf32> to vector<16x16xf32>
    %38 = vector.extract_strided_slice %34 {offsets = [48, 0], sizes = [16, 16], strides = [1, 1]} : vector<144x16xf32> to vector<16x16xf32>
    %39 = vector.extract_strided_slice %34 {offsets = [64, 0], sizes = [16, 16], strides = [1, 1]} : vector<144x16xf32> to vector<16x16xf32>
    %40 = vector.extract_strided_slice %34 {offsets = [80, 0], sizes = [16, 16], strides = [1, 1]} : vector<144x16xf32> to vector<16x16xf32>
    %41 = vector.extract_strided_slice %34 {offsets = [96, 0], sizes = [16, 16], strides = [1, 1]} : vector<144x16xf32> to vector<16x16xf32>
    %42 = vector.extract_strided_slice %34 {offsets = [112, 0], sizes = [16, 16], strides = [1, 1]} : vector<144x16xf32> to vector<16x16xf32>
    %43 = vector.extract_strided_slice %34 {offsets = [128, 0], sizes = [16, 16], strides = [1, 1]} : vector<144x16xf32> to vector<16x16xf32>
    %44 = tpu.concatenate %35, %36, %37, %38, %39, %40, %41, %42, %43 in 1 : vector<16x16xf32>, vector<16x16xf32>, vector<16x16xf32>, vector<16x16xf32>, vector<16x16xf32>, vector<16x16xf32>, vector<16x16xf32>, vector<16x16xf32>, vector<16x16xf32> -> vector<16x144xf32>
    %c0_20 = arith.constant 0 : index
    %c0_21 = arith.constant 0 : index
    %45 = vector.load %arg8[%c0_20, %c0_21] : memref<144x32xf32, #tpu.memory_space<vmem>>, vector<144x32xf32>
    %cst_22 = arith.constant dense<0.000000e+00> : vector<16x32xf32>
    %46 = tpu.matmul %44, %45, %cst_22 {dimension_numbers = #tpu.dot_dimension_numbers<[1], [0], [0], [1], [0, 0, 1, 1], [], []>} : vector<16x144xf32>, vector<144x32xf32>, vector<16x32xf32> -> vector<16x32xf32>
    %c0_23 = arith.constant 0 : index
    %c0_24 = arith.constant 0 : index
    %47 = vector.load %arg9[%c0_23, %c0_24] : memref<1x32xf32, #tpu.memory_space<vmem>>, vector<1x32xf32>
    %48 = vector.broadcast %47 : vector<1x32xf32> to vector<16x32xf32>
    %49 = arith.addf %46, %48 : vector<16x32xf32>
    %cst_25 = arith.constant 0.000000e+00 : f32
    %50 = vector.broadcast %cst_25 : f32 to vector<16x32xf32>
    %51 = arith.cmpf oge, %49, %50 : vector<16x32xf32>
    %cst_26 = arith.constant 2.000000e-01 : f32
    %52 = vector.broadcast %cst_26 : f32 to vector<16x32xf32>
    %53 = arith.mulf %52, %49 : vector<16x32xf32>
    %54 = arith.select %51, %49, %53 : vector<16x32xi1>, vector<16x32xf32>
    %c0_27 = arith.constant 0 : index
    %c0_28 = arith.constant 0 : index
    %55 = vector.load %arg10[%c0_27, %c0_28] : memref<16x32xf32, #tpu.memory_space<vmem>>, vector<16x32xf32>
    %56 = arith.mulf %54, %55 : vector<16x32xf32>
    %cst_29 = arith.constant 1.000000e+00 : f32
    %57 = vector.broadcast %cst_29 : f32 to vector<32x1xf32>
    %cst_30 = arith.constant dense<0.000000e+00> : vector<16x1xf32>
    %58 = tpu.matmul %56, %57, %cst_30 {dimension_numbers = #tpu.dot_dimension_numbers<[1], [0], [0], [1], [0, 0, 1, 1], [], []>} : vector<16x32xf32>, vector<32x1xf32>, vector<16x1xf32> -> vector<16x1xf32>
    %59 = vector.shape_cast %58 : vector<16x1xf32> to vector<1x16x1xf32>
    %cst_31 = arith.constant dense<0.000000e+00> : vector<1xf32>
    %60 = vector.multi_reduction <add>, %59, %cst_31 [1, 2] : vector<1x16x1xf32> to vector<1xf32>
    %61 = vector.shape_cast %60 : vector<1xf32> to vector<1x1x1xf32>
    %62 = vector.extract %61[0, 0, 0] : f32 from vector<1x1x1xf32>
    %63 = vector.broadcast %62 : f32 to vector<1x1xf32>
    %c0_32 = arith.constant 0 : index
    %c0_33 = arith.constant 0 : index
    %64 = vector.load %arg11[%c0_32, %c0_33] : memref<1x1xf32, #tpu.memory_space<vmem>>, vector<1x1xf32>
    %65 = arith.addf %63, %64 : vector<1x1xf32>
    %cst_34 = arith.constant 0.000000e+00 : f32
    %66 = vector.broadcast %cst_34 : f32 to vector<1x1xf32>
    %67 = arith.subf %66, %65 : vector<1x1xf32>
    %68 = math.exp %67 : vector<1x1xf32>
    %cst_35 = arith.constant 1.000000e+00 : f32
    %69 = vector.broadcast %cst_35 : f32 to vector<1x1xf32>
    %70 = arith.addf %69, %68 : vector<1x1xf32>
    %cst_36 = arith.constant 1.000000e+00 : f32
    %71 = vector.broadcast %cst_36 : f32 to vector<1x1xf32>
    %72 = arith.divf %71, %70 : vector<1x1xf32>
    %73 = math.exp %65 : vector<1x1xf32>
    %cst_37 = arith.constant 1.000000e+00 : f32
    %74 = vector.broadcast %cst_37 : f32 to vector<1x1xf32>
    %75 = arith.addf %74, %73 : vector<1x1xf32>
    %76 = arith.divf %73, %75 : vector<1x1xf32>
    %cst_38 = arith.constant 0.000000e+00 : f32
    %77 = vector.broadcast %cst_38 : f32 to vector<1x1xf32>
    %78 = arith.cmpf oge, %65, %77 : vector<1x1xf32>
    %79 = arith.select %78, %72, %76 : vector<1x1xi1>, vector<1x1xf32>
    %80 = vector.shape_cast %79 : vector<1x1xf32> to vector<1x1xf32>
    %81 = vector.broadcast %80 : vector<1x1xf32> to vector<8x128xf32>
    %c0_39 = arith.constant 0 : index
    %c0_40 = arith.constant 0 : index
    %82 = vector.load %arg12[%c0_39, %c0_40] : memref<8x128xf32, #tpu.memory_space<vmem>>, vector<8x128xf32>
    tpu.vector_store %arg12[%c0_39, %c0_40], %81 {strides = array<i32>} : memref<8x128xf32, #tpu.memory_space<vmem>>, vector<8x128xf32>,
    return
  }
  func.func @transform_0(%arg0: i32) -> (i32, i32) {
    %c0_i32 = arith.constant 0 : i32
    %c0_i32_0 = arith.constant 0 : i32
    return %arg0, %c0_i32 : i32, i32
  }
  func.func @transform_1(%arg0: i32) -> (i32, i32) {
    %c0_i32 = arith.constant 0 : i32
    %c0_i32_0 = arith.constant 0 : i32
    %c0_i32_1 = arith.constant 0 : i32
    return %c0_i32, %c0_i32_0 : i32, i32
  }
  func.func @transform_2(%arg0: i32) -> (i32, i32) {
    %c0_i32 = arith.constant 0 : i32
    %c0_i32_0 = arith.constant 0 : i32
    %c0_i32_1 = arith.constant 0 : i32
    return %c0_i32, %c0_i32_0 : i32, i32
  }
  func.func @transform_3(%arg0: i32) -> (i32, i32) {
    %c0_i32 = arith.constant 0 : i32
    %c0_i32_0 = arith.constant 0 : i32
    %c0_i32_1 = arith.constant 0 : i32
    return %c0_i32, %c0_i32_0 : i32, i32
  }
  func.func @transform_4(%arg0: i32) -> (i32, i32) {
    %c0_i32 = arith.constant 0 : i32
    %c0_i32_0 = arith.constant 0 : i32
    %c0_i32_1 = arith.constant 0 : i32
    return %c0_i32, %c0_i32_0 : i32, i32
  }
  func.func @transform_5(%arg0: i32) -> (i32, i32) {
    %c0_i32 = arith.constant 0 : i32
    %c0_i32_0 = arith.constant 0 : i32
    %c0_i32_1 = arith.constant 0 : i32
    return %c0_i32, %c0_i32_0 : i32, i32
  }
  func.func @transform_6(%arg0: i32) -> (i32, i32) {
    %c0_i32 = arith.constant 0 : i32
    %c0_i32_0 = arith.constant 0 : i32
    %c0_i32_1 = arith.constant 0 : i32
    return %c0_i32, %c0_i32_0 : i32, i32
  }
  func.func @transform_7(%arg0: i32) -> (i32, i32) {
    %c0_i32 = arith.constant 0 : i32
    %c0_i32_0 = arith.constant 0 : i32
    %c0_i32_1 = arith.constant 0 : i32
    return %c0_i32, %c0_i32_0 : i32, i32
  }
  func.func @transform_8(%arg0: i32) -> (i32, i32) {
    %c0_i32 = arith.constant 0 : i32
    %c0_i32_0 = arith.constant 0 : i32
    %c0_i32_1 = arith.constant 0 : i32
    return %c0_i32, %c0_i32_0 : i32, i32
  }
  func.func @transform_9(%arg0: i32) -> (i32, i32) {
    %c0_i32 = arith.constant 0 : i32
    %c0_i32_0 = arith.constant 0 : i32
    %c0_i32_1 = arith.constant 0 : i32
    return %c0_i32, %c0_i32_0 : i32, i32
  }
  func.func @transform_10(%arg0: i32) -> (i32, i32) {
    %c0_i32 = arith.constant 0 : i32
    %c0_i32_0 = arith.constant 0 : i32
    %c0_i32_1 = arith.constant 0 : i32
    return %c0_i32, %c0_i32_0 : i32, i32
  }
  func.func @transform_11(%arg0: i32) -> (i32, i32) {
    %c0_i32 = arith.constant 0 : i32
    %c0_i32_0 = arith.constant 0 : i32
    return %arg0, %c0_i32 : i32, i32
  }
}

</mosaic_0001>

<llo_original>
// kernel: backup_gan_forward.1
$region0: #{backup_gan_forward.1}
  #allocation0 [shape = 'u32[]', space=smem, size = 0x4, offset = 0x4, fixed_abs, tag = 'smem constant byte address 0x4 - core index']
  #allocation1 [shape = 'u32[144,128]{1,0:T(1,128)}', space=vmem, size = 0x12000, scoped, tag = 'internal scratch']
  #allocation2 [shape = 'f32[1,1]{1,0:T(1,128)S(1)}', space=vmem, size = 0x200, scoped, tag = 'scoped memory for backup_gan_forward.1']
  %s0 = inlined_call_operand.vmem [shape: f32[512,27], index: 0, kind: input, shape index: {}]
  %s1 = inlined_call_operand.vmem [shape: f32[27,8], index: 1, kind: input, shape index: {}]
  %s2 = inlined_call_operand.vmem [shape: f32[1,8], index: 2, kind: input, shape index: {}]
  %s3 = inlined_call_operand.vmem [shape: f32[576,256], index: 3, kind: input, shape index: {}]
  %s4 = inlined_call_operand.vmem [shape: f32[72,16], index: 4, kind: input, shape index: {}]
  %s5 = inlined_call_operand.vmem [shape: f32[1,16], index: 5, kind: input, shape index: {}]
  %s6 = inlined_call_operand.vmem [shape: f32[144,64], index: 6, kind: input, shape index: {}]
  %s7 = inlined_call_operand.vmem [shape: f32[144,32], index: 7, kind: input, shape index: {}]
  %s8 = inlined_call_operand.vmem [shape: f32[1,32], index: 8, kind: input, shape index: {}]
  %s9 = inlined_call_operand.vmem [shape: f32[16,32], index: 9, kind: input, shape index: {}]
  %s10 = inlined_call_operand.<no memory space> [shape: f32[1,1], index: 10, kind: input, shape index: {}]
  %s11 = inlined_call_operand.vmem [shape: f32[16,128], index: 11, kind: output, shape index: {}]
  %s12 = sld [smem:[#allocation0]]
  $region77: #{backup_gan_forward.1} parent=0
    _
  %s14 = ssub.s32 1, %s12
  %s15 = scalar_select 0, %s14, %s12
  %v16 = vstv %s10
  %17 = vst [vmem:[#allocation2] sm:$0x1] %v16
  loop: start=0, step=1, limit=4
  $region2: #{backup_gan_forward.1} parent=0 // loop_pre_header
    _
  $region3: #{backup_gan_forward.1} parent=0 // loop_header
    %s19 = sphi 0, %s23
    %p20 = scmp.ge.s32.totalorder %s19, 4
    %s29 = sphi 0, %s31
    %s32 = sphi 0, %s29
    %s33 = sphi 0, %s32
    %s49 = sphi 0, %s33
    %s53 = sphi 0, %s53
    %s55 = sphi 0, %s53
    %s56 = sphi 0, %s55
    %s70 = sphi 0, %s56
    %s74 = sphi 0, %s74
    %s76 = sphi 0, %s74
    %s77 = sphi 0, %s76
    %s91 = sphi 0, %s77
    %s95 = sphi 0, %s95
    %s97 = sphi 0, %s95
    %s98 = sphi 0, %s97
    %s112 = sphi 0, %s98
    %s116 = sphi 0, %s116
    %s118 = sphi 0, %s116
    %s119 = sphi 0, %s118
    %s133 = sphi 0, %s119
    %s137 = sphi 0, %s137
    %s139 = sphi 0, %s137
    %s140 = sphi 0, %s139
    %s154 = sphi 0, %s140
    %s158 = sphi 0, %s158
    %s160 = sphi 0, %s158
    %s161 = sphi 0, %s160
    %s175 = sphi 0, %s161
    %s179 = sphi 0, %s179
    %s181 = sphi 0, %s179
    %s182 = sphi 0, %s181
    %s196 = sphi 0, %s182
    %s200 = sphi 0, %s200
    %s202 = sphi 0, %s200
    %s203 = sphi 0, %s202
    %s217 = sphi 0, %s203
    %s221 = sphi 0, %s221
    %s223 = sphi 0, %s221
    %s224 = sphi 0, %s223
    %s238 = sphi 0, %s224
    %s242 = sphi 0, %s242
    %s244 = sphi 0, %s242
    %s245 = sphi 0, %s244
    %s259 = sphi 0, %s245
    %s265 = sphi 0, %s267
    %s268 = sphi 0, %s265
    %s269 = sphi 0, %s268
    %s285 = sphi 0, %s269
  $region4: #{backup_gan_forward.1} parent=0 // loop_header_branch
    %22 = sbr.rel (%p20) target = $region8
  $region5: #{backup_gan_forward.1} parent=0 // loop_body
    %s24 = ssub.s32 %s19, 1
    %s25 = ssub.s32 %s19, 2
    %s26 = sadd.s32 %s19, 1
    %s27 = ssub.s32 %s19, %s26
    %p28 = scmp.eq.s32.totalorder %s27, 0
    %s30 = sadd.s32 %s29, 1
    %s31 = scalar_select %p28, %s29, %s30
    %p34 = pneg %p28
    %p35 = scmp.eq.s32.totalorder %s19, 1
    %p36 = por %p34, %p35
    %p37 = scmp.ne.s32.totalorder %s29, %s32
    %p38 = scmp.eq.s32.totalorder %s19, 0
    %p39 = por %p37, %p38
    %p40 = scmp.ne.s32.totalorder %s29, %s32
    %p41 = scmp.eq.s32.totalorder %s24, 1
    %p42 = por %p40, %p41
    %p43 = scmp.ne.s32.totalorder %s32, %s33
    %p44 = scmp.eq.s32.totalorder %s24, 0
    %p45 = por %p43, %p44
    %p46 = scmp.ne.s32.totalorder %s32, %s33
    %p47 = scmp.eq.s32.totalorder %s25, 1
    %p48 = por %p46, %p47
    %p50 = scmp.ne.s32.totalorder %s33, %s49
    %p51 = scmp.eq.s32.totalorder %s25, 0
    %p52 = por %p50, %p51
    %s54 = sadd.s32 %s53, 1
    %p57 = scmp.eq.s32.totalorder %s19, 1
    %p58 = scmp.ne.s32.totalorder %s53, %s55
    %p59 = scmp.eq.s32.totalorder %s19, 0
    %p60 = por %p58, %p59
    %p61 = scmp.ne.s32.totalorder %s53, %s55
    %p62 = scmp.eq.s32.totalorder %s24, 1
    %p63 = por %p61, %p62
    %p64 = scmp.ne.s32.totalorder %s55, %s56
    %p65 = scmp.eq.s32.totalorder %s24, 0
    %p66 = por %p64, %p65
    %p67 = scmp.ne.s32.totalorder %s55, %s56
    %p68 = scmp.eq.s32.totalorder %s25, 1
    %p69 = por %p67, %p68
    %p71 = scmp.ne.s32.totalorder %s56, %s70
    %p72 = scmp.eq.s32.totalorder %s25, 0
    %p73 = por %p71, %p72
    %s75 = sadd.s32 %s74, 1
    %p78 = scmp.eq.s32.totalorder %s19, 1
    %p79 = scmp.ne.s32.totalorder %s74, %s76
    %p80 = scmp.eq.s32.totalorder %s19, 0
    %p81 = por %p79, %p80
    %p82 = scmp.ne.s32.totalorder %s74, %s76
    %p83 = scmp.eq.s32.totalorder %s24, 1
    %p84 = por %p82, %p83
    %p85 = scmp.ne.s32.totalorder %s76, %s77
    %p86 = scmp.eq.s32.totalorder %s24, 0
    %p87 = por %p85, %p86
    %p88 = scmp.ne.s32.totalorder %s76, %s77
    %p89 = scmp.eq.s32.totalorder %s25, 1
    %p90 = por %p88, %p89
    %p92 = scmp.ne.s32.totalorder %s77, %s91
    %p93 = scmp.eq.s32.totalorder %s25, 0
    %p94 = por %p92, %p93
    %s96 = sadd.s32 %s95, 1
    %p99 = scmp.eq.s32.totalorder %s19, 1
    %p100 = scmp.ne.s32.totalorder %s95, %s97
    %p101 = scmp.eq.s32.totalorder %s19, 0
    %p102 = por %p100, %p101
    %p103 = scmp.ne.s32.totalorder %s95, %s97
    %p104 = scmp.eq.s32.totalorder %s24, 1
    %p105 = por %p103, %p104
    %p106 = scmp.ne.s32.totalorder %s97, %s98
    %p107 = scmp.eq.s32.totalorder %s24, 0
    %p108 = por %p106, %p107
    %p109 = scmp.ne.s32.totalorder %s97, %s98
    %p110 = scmp.eq.s32.totalorder %s25, 1
    %p111 = por %p109, %p110
    %p113 = scmp.ne.s32.totalorder %s98, %s112
    %p114 = scmp.eq.s32.totalorder %s25, 0
    %p115 = por %p113, %p114
    %s117 = sadd.s32 %s116, 1
    %p120 = scmp.eq.s32.totalorder %s19, 1
    %p121 = scmp.ne.s32.totalorder %s116, %s118
    %p122 = scmp.eq.s32.totalorder %s19, 0
    %p123 = por %p121, %p122
    %p124 = scmp.ne.s32.totalorder %s116, %s118
    %p125 = scmp.eq.s32.totalorder %s24, 1
    %p126 = por %p124, %p125
    %p127 = scmp.ne.s32.totalorder %s118, %s119
    %p128 = scmp.eq.s32.totalorder %s24, 0
    %p129 = por %p127, %p128
    %p130 = scmp.ne.s32.totalorder %s118, %s119
    %p131 = scmp.eq.s32.totalorder %s25, 1
    %p132 = por %p130, %p131
    %p134 = scmp.ne.s32.totalorder %s119, %s133
    %p135 = scmp.eq.s32.totalorder %s25, 0
    %p136 = por %p134, %p135
    %s138 = sadd.s32 %s137, 1
    %p141 = scmp.eq.s32.totalorder %s19, 1
    %p142 = scmp.ne.s32.totalorder %s137, %s139
    %p143 = scmp.eq.s32.totalorder %s19, 0
    %p144 = por %p142, %p143
    %p145 = scmp.ne.s32.totalorder %s137, %s139
    %p146 = scmp.eq.s32.totalorder %s24, 1
    %p147 = por %p145, %p146
    %p148 = scmp.ne.s32.totalorder %s139, %s140
    %p149 = scmp.eq.s32.totalorder %s24, 0
    %p150 = por %p148, %p149
    %p151 = scmp.ne.s32.totalorder %s139, %s140
    %p152 = scmp.eq.s32.totalorder %s25, 1
    %p153 = por %p151, %p152
    %p155 = scmp.ne.s32.totalorder %s140, %s154
    %p156 = scmp.eq.s32.totalorder %s25, 0
    %p157 = por %p155, %p156
    %s159 = sadd.s32 %s158, 1
    %p162 = scmp.eq.s32.totalorder %s19, 1
    %p163 = scmp.ne.s32.totalorder %s158, %s160
    %p164 = scmp.eq.s32.totalorder %s19, 0
    %p165 = por %p163, %p164
    %p166 = scmp.ne.s32.totalorder %s158, %s160
    %p167 = scmp.eq.s32.totalorder %s24, 1
    %p168 = por %p166, %p167
    %p169 = scmp.ne.s32.totalorder %s160, %s161
    %p170 = scmp.eq.s32.totalorder %s24, 0
    %p171 = por %p169, %p170
    %p172 = scmp.ne.s32.totalorder %s160, %s161
    %p173 = scmp.eq.s32.totalorder %s25, 1
    %p174 = por %p172, %p173
    %p176 = scmp.ne.s32.totalorder %s161, %s175
    %p177 = scmp.eq.s32.totalorder %s25, 0
    %p178 = por %p176, %p177
    %s180 = sadd.s32 %s179, 1
    %p183 = scmp.eq.s32.totalorder %s19, 1
    %p184 = scmp.ne.s32.totalorder %s179, %s181
    %p185 = scmp.eq.s32.totalorder %s19, 0
    %p186 = por %p184, %p185
    %p187 = scmp.ne.s32.totalorder %s179, %s181
    %p188 = scmp.eq.s32.totalorder %s24, 1
    %p189 = por %p187, %p188
    %p190 = scmp.ne.s32.totalorder %s181, %s182
    %p191 = scmp.eq.s32.totalorder %s24, 0
    %p192 = por %p190, %p191
    %p193 = scmp.ne.s32.totalorder %s181, %s182
    %p194 = scmp.eq.s32.totalorder %s25, 1
    %p195 = por %p193, %p194
    %p197 = scmp.ne.s32.totalorder %s182, %s196
    %p198 = scmp.eq.s32.totalorder %s25, 0
    %p199 = por %p197, %p198
    %s201 = sadd.s32 %s200, 1
    %p204 = scmp.eq.s32.totalorder %s19, 1
    %p205 = scmp.ne.s32.totalorder %s200, %s202
    %p206 = scmp.eq.s32.totalorder %s19, 0
    %p207 = por %p205, %p206
    %p208 = scmp.ne.s32.totalorder %s200, %s202
    %p209 = scmp.eq.s32.totalorder %s24, 1
    %p210 = por %p208, %p209
    %p211 = scmp.ne.s32.totalorder %s202, %s203
    %p212 = scmp.eq.s32.totalorder %s24, 0
    %p213 = por %p211, %p212
    %p214 = scmp.ne.s32.totalorder %s202, %s203
    %p215 = scmp.eq.s32.totalorder %s25, 1
    %p216 = por %p214, %p215
    %p218 = scmp.ne.s32.totalorder %s203, %s217
    %p219 = scmp.eq.s32.totalorder %s25, 0
    %p220 = por %p218, %p219
    %s222 = sadd.s32 %s221, 1
    %p225 = scmp.eq.s32.totalorder %s19, 1
    %p226 = scmp.ne.s32.totalorder %s221, %s223
    %p227 = scmp.eq.s32.totalorder %s19, 0
    %p228 = por %p226, %p227
    %p229 = scmp.ne.s32.totalorder %s221, %s223
    %p230 = scmp.eq.s32.totalorder %s24, 1
    %p231 = por %p229, %p230
    %p232 = scmp.ne.s32.totalorder %s223, %s224
    %p233 = scmp.eq.s32.totalorder %s24, 0
    %p234 = por %p232, %p233
    %p235 = scmp.ne.s32.totalorder %s223, %s224
    %p236 = scmp.eq.s32.totalorder %s25, 1
    %p237 = por %p235, %p236
    %p239 = scmp.ne.s32.totalorder %s224, %s238
    %p240 = scmp.eq.s32.totalorder %s25, 0
    %p241 = por %p239, %p240
    %s243 = sadd.s32 %s242, 1
    %p246 = scmp.eq.s32.totalorder %s19, 1
    %p247 = scmp.ne.s32.totalorder %s242, %s244
    %p248 = scmp.eq.s32.totalorder %s19, 0
    %p249 = por %p247, %p248
    %p250 = scmp.ne.s32.totalorder %s242, %s244
    %p251 = scmp.eq.s32.totalorder %s24, 1
    %p252 = por %p250, %p251
    %p253 = scmp.ne.s32.totalorder %s244, %s245
    %p254 = scmp.eq.s32.totalorder %s24, 0
    %p255 = por %p253, %p254
    %p256 = scmp.ne.s32.totalorder %s244, %s245
    %p257 = scmp.eq.s32.totalorder %s25, 1
    %p258 = por %p256, %p257
    %p260 = scmp.ne.s32.totalorder %s245, %s259
    %p261 = scmp.eq.s32.totalorder %s25, 0
    %p262 = por %p260, %p261
    %s263 = ssub.s32 %s19, %s26
    %p264 = scmp.eq.s32.totalorder %s263, 0
    %s266 = sadd.s32 %s265, 1
    %s267 = scalar_select %p264, %s265, %s266
    %p270 = pneg %p264
    %p271 = scmp.eq.s32.totalorder %s19, 1
    %p272 = por %p270, %p271
    %p273 = scmp.ne.s32.totalorder %s265, %s268
    %p274 = scmp.eq.s32.totalorder %s19, 0
    %p275 = por %p273, %p274
    %p276 = scmp.ne.s32.totalorder %s265, %s268
    %p277 = scmp.eq.s32.totalorder %s24, 1
    %p278 = por %p276, %p277
    %p279 = scmp.ne.s32.totalorder %s268, %s269
    %p280 = scmp.eq.s32.totalorder %s24, 0
    %p281 = por %p279, %p280
    %p282 = scmp.ne.s32.totalorder %s268, %s269
    %p283 = scmp.eq.s32.totalorder %s25, 1
    %p284 = por %p282, %p283
    %p286 = scmp.ne.s32.totalorder %s269, %s285
    %p287 = scmp.eq.s32.totalorder %s25, 0
    %p288 = por %p286, %p287
    %p289 = scmp.le.s32.totalorder 1, %s19
    %p290 = scmp.lt.s32.totalorder %s19, 3
    %p291 = pnand %p289, %p290
    %p292 = pneg %p291
    // Predicated region
    $region9: #{backup_gan_forward.1} parent=5 // pred_check
      _
    $region10: #{backup_gan_forward.1} parent=5 // pred_check_branch
      %294 = sbr.rel (%p291) target = $region12
    $region11: #{backup_gan_forward.1} parent=5 // pred_region
      %s295 = ssub.s32 %s19, 1
      // Predicated region
      $region13: #{backup_gan_forward.1} parent=11 // pred_check
        %p296 = pneg %p66
      $region14: #{backup_gan_forward.1} parent=11 // pred_check_branch
        %298 = sbr.rel (%p296) target = $region16
      $region15: #{backup_gan_forward.1} parent=11 // pred_region
        _
      $region16: #{backup_gan_forward.1} parent=11 // pred_fallthru
        _
      // Predicated region
      $region17: #{backup_gan_forward.1} parent=11 // pred_check
        %p299 = pneg %p87
      $region18: #{backup_gan_forward.1} parent=11 // pred_check_branch
        %301 = sbr.rel (%p299) target = $region20
      $region19: #{backup_gan_forward.1} parent=11 // pred_region
        _
      $region20: #{backup_gan_forward.1} parent=11 // pred_fallthru
        _
      // Predicated region
      $region21: #{backup_gan_forward.1} parent=11 // pred_check
        %p302 = pneg %p108
      $region22: #{backup_gan_forward.1} parent=11 // pred_check_branch
        %304 = sbr.rel (%p302) target = $region24
      $region23: #{backup_gan_forward.1} parent=11 // pred_region
        _
      $region24: #{backup_gan_forward.1} parent=11 // pred_fallthru
        _
      // Predicated region
      $region25: #{backup_gan_forward.1} parent=11 // pred_check
        %p305 = pneg %p129
      $region26: #{backup_gan_forward.1} parent=11 // pred_check_branch
        %307 = sbr.rel (%p305) target = $region28
      $region27: #{backup_gan_forward.1} parent=11 // pred_region
        _
      $region28: #{backup_gan_forward.1} parent=11 // pred_fallthru
        _
      // Predicated region
      $region29: #{backup_gan_forward.1} parent=11 // pred_check
        %p308 = pneg %p150
      $region30: #{backup_gan_forward.1} parent=11 // pred_check_branch
        %310 = sbr.rel (%p308) target = $region32
      $region31: #{backup_gan_forward.1} parent=11 // pred_region
        _
      $region32: #{backup_gan_forward.1} parent=11 // pred_fallthru
        _
      // Predicated region
      $region33: #{backup_gan_forward.1} parent=11 // pred_check
        %p311 = pneg %p171
      $region34: #{backup_gan_forward.1} parent=11 // pred_check_branch
        %313 = sbr.rel (%p311) target = $region36
      $region35: #{backup_gan_forward.1} parent=11 // pred_region
        _
      $region36: #{backup_gan_forward.1} parent=11 // pred_fallthru
        _
      // Predicated region
      $region37: #{backup_gan_forward.1} parent=11 // pred_check
        %p314 = pneg %p192
      $region38: #{backup_gan_forward.1} parent=11 // pred_check_branch
        %316 = sbr.rel (%p314) target = $region40
      $region39: #{backup_gan_forward.1} parent=11 // pred_region
        _
      $region40: #{backup_gan_forward.1} parent=11 // pred_fallthru
        _
      // Predicated region
      $region41: #{backup_gan_forward.1} parent=11 // pred_check
        %p317 = pneg %p213
      $region42: #{backup_gan_forward.1} parent=11 // pred_check_branch
        %319 = sbr.rel (%p317) target = $region44
      $region43: #{backup_gan_forward.1} parent=11 // pred_region
        _
      $region44: #{backup_gan_forward.1} parent=11 // pred_fallthru
        _
      // Predicated region
      $region45: #{backup_gan_forward.1} parent=11 // pred_check
        %p320 = pneg %p234
      $region46: #{backup_gan_forward.1} parent=11 // pred_check_branch
        %322 = sbr.rel (%p320) target = $region48
      $region47: #{backup_gan_forward.1} parent=11 // pred_region
        _
      $region48: #{backup_gan_forward.1} parent=11 // pred_fallthru
        _
      // Predicated region
      $region49: #{backup_gan_forward.1} parent=11 // pred_check
        %p323 = pneg %p255
      $region50: #{backup_gan_forward.1} parent=11 // pred_check_branch
        %325 = sbr.rel (%p323) target = $region52
      $region51: #{backup_gan_forward.1} parent=11 // pred_region
        _
      $region52: #{backup_gan_forward.1} parent=11 // pred_fallthru
        _
    $region12: #{backup_gan_forward.1} parent=5 // pred_fallthru
      _
    %p326 = scmp.lt.s32.totalorder %s19, 2
    // Predicated region
    $region53: #{backup_gan_forward.1} parent=5 // pred_check
      %p327 = pneg %p326
    $region54: #{backup_gan_forward.1} parent=5 // pred_check_branch
      %329 = sbr.rel (%p327) target = $region56
    $region55: #{backup_gan_forward.1} parent=5 // pred_region
      // Predicated region
      $region57: #{backup_gan_forward.1} parent=55 // pred_check
        %p330 = pneg %p39
      $region58: #{backup_gan_forward.1} parent=55 // pred_check_branch
        %332 = sbr.rel (%p330) target = $region60
      $region59: #{backup_gan_forward.1} parent=55 // pred_region
        %s333 = smul.u32 32, %s19
        %p334 = scmp.lt.s32.totalorder %s333, 63
        %s335 = scalar_select %p334, %s333, 63
        %s336 = smul.addr %s335, 8
        %s337 = scalar_lea.vmem %s0, %s336
        %s338 = smul.u32 32, %s19
      $region60: #{backup_gan_forward.1} parent=55 // pred_fallthru
        _
    $region56: #{backup_gan_forward.1} parent=5 // pred_fallthru
      _
    %p339 = scmp.le.s32.totalorder 1, %s19
    %p340 = scmp.lt.s32.totalorder %s19, 3
    %p341 = pnand %p339, %p340
    %p342 = pneg %p341
    // Predicated region
    $region61: #{backup_gan_forward.1} parent=5 // pred_check
      _
    $region62: #{backup_gan_forward.1} parent=5 // pred_check_branch
      %344 = sbr.rel (%p341) target = $region64
    $region63: #{backup_gan_forward.1} parent=5 // pred_region
      %s345 = ssub.s32 %s19, 1
      %s346 = smul.u32 32, %s24
      %p347 = scmp.lt.s32.totalorder %s346, 63
      %s348 = scalar_select %p347, %s346, 63
      %s349 = smul.addr %s348, 8
      %s350 = scalar_lea.vmem %s0, %s349
      %p351 = pneg %p45
      %p352 = pneg %p42
      %p353 = pneg %p66
      %p354 = pneg %p63
      %p355 = pneg %p87
      %p356 = pneg %p84
      %p357 = pneg %p108
      %p358 = pneg %p105
      %p359 = pneg %p129
      %p360 = pneg %p126
      %p361 = pneg %p150
      %p362 = pneg %p147
      %p363 = pneg %p171
      %p364 = pneg %p168
      %p365 = pneg %p192
      %p366 = pneg %p189
      %p367 = pneg %p213
      %p368 = pneg %p210
      %p369 = pneg %p234
      %p370 = pneg %p231
      %p371 = pneg %p255
      %p372 = pneg %p252
      %p373 = pneg %p281
      %p374 = pneg %p278
      %p375 = scmp.lt.s32.totalorder %s24, 1
      %s376 = scalar_select %p375, %s24, 1
      %s377 = smul.addr %s376, 8
      %s378 = scalar_lea.vmem %s11, %s377
      %s379 = smul.u32 32, %s24
      %p380 = scmp.lt.s32.totalorder %s379, 63
      %s381 = scalar_select %p380, %s379, 63
      %s382 = smul.addr %s381, 8
      %s383 = scalar_lea.vmem %s0, %s382
      %s384 = smul.u32 32, %s24
      %p385 = scmp.lt.s32.totalorder %s24, 1
      %s386 = scalar_select %p385, %s24, 1
      %s387 = smul.addr %s386, 8
      %s388 = scalar_lea.vmem %s11, %s387
      %v389 = vld [vmem:[%s383] sm:$0xff]
      %v390 = vld [vmem:[%s383 + $0x8] sm:$0xff]
      %v391 = vld [vmem:[%s383 + $0x10] sm:$0xff]
      %v392 = vld [vmem:[%s383 + $0x18] sm:$0xff]
      %v393 = vld [vmem:[%s383 + $0x20] sm:$0xff]
      %v394 = vld [vmem:[%s383 + $0x28] sm:$0xff]
      %v395 = vld [vmem:[%s383 + $0x30] sm:$0xff]
      %v396 = vld [vmem:[%s383 + $0x38] sm:$0xff]
      %v397 = vld [vmem:[%s383 + $0x40] sm:$0xff]
      %v398 = vld [vmem:[%s383 + $0x48] sm:$0xff]
      %v399 = vld [vmem:[%s383 + $0x50] sm:$0xff]
      %v400 = vld [vmem:[%s383 + $0x58] sm:$0xff]
      %v401 = vld [vmem:[%s383 + $0x60] sm:$0xff]
      %v402 = vld [vmem:[%s383 + $0x68] sm:$0xff]
      %v403 = vld [vmem:[%s383 + $0x70] sm:$0xff]
      %v404 = vld [vmem:[%s383 + $0x78] sm:$0xff]
      %v405 = vld [vmem:[%s383 + $0x80] sm:$0xff]
      %v406 = vld [vmem:[%s383 + $0x88] sm:$0xff]
      %v407 = vld [vmem:[%s383 + $0x90] sm:$0xff]
      %v408 = vld [vmem:[%s383 + $0x98] sm:$0xff]
      %v409 = vld [vmem:[%s383 + $0xa0] sm:$0xff]
      %v410 = vld [vmem:[%s383 + $0xa8] sm:$0xff]
      %v411 = vld [vmem:[%s383 + $0xb0] sm:$0xff]
      %v412 = vld [vmem:[%s383 + $0xb8] sm:$0xff]
      %v413 = vld [vmem:[%s383 + $0xc0] sm:$0xff]
      %v414 = vld [vmem:[%s383 + $0xc8] sm:$0xff]
      %v415 = vld [vmem:[%s383 + $0xd0] sm:$0xff]
      %v416 = vld [vmem:[%s383 + $0xd8] sm:$0xff]
      %v417 = vld [vmem:[%s383 + $0xe0] sm:$0xff]
      %v418 = vld [vmem:[%s383 + $0xe8] sm:$0xff]
      %v419 = vld [vmem:[%s383 + $0xf0] sm:$0xff]
      %v420 = vld [vmem:[%s383 + $0xf8] sm:$0xff]
      %v421 = vld [vmem:[%s1] sm:$0xff]
      %v422 = vld [vmem:[%s1 + $0x8] sm:$0xff]
      %v423 = vld [vmem:[%s1 + $0x10] sm:$0xff]
      %v424 = vld [vmem:[%s1 + $0x18] sm:$0x7]
      %v425 = vld [vmem:[%s2] sm:$0x1]
      %v427 = vlaneseq
      %v428 = vshrl.u32 %v427, 7
      %v429 = vsub.s32 0, %v428
      %v430 = vrot.slane %v425, %v429
      %vm432 = vcmask 220160
      %v434 = vsel %vm432, %v389, 0
      %v437 = vsel %vm432, %v390, 0
      %v440 = vsel %vm432, %v391, 0
      %v443 = vsel %vm432, %v392, 0
      %v446 = vsel %vm432, %v393, 0
      %v449 = vsel %vm432, %v394, 0
      %v452 = vsel %vm432, %v395, 0
      %v455 = vsel %vm432, %v396, 0
      %v458 = vsel %vm432, %v397, 0
      %v461 = vsel %vm432, %v398, 0
      %v464 = vsel %vm432, %v399, 0
      %v467 = vsel %vm432, %v400, 0
      %v470 = vsel %vm432, %v401, 0
      %v473 = vsel %vm432, %v402, 0
      %v476 = vsel %vm432, %v403, 0
      %v479 = vsel %vm432, %v404, 0
      %v482 = vsel %vm432, %v405, 0
      %v485 = vsel %vm432, %v406, 0
      %v488 = vsel %vm432, %v407, 0
      %v491 = vsel %vm432, %v408, 0
      %v494 = vsel %vm432, %v409, 0
      %v497 = vsel %vm432, %v410, 0
      %v500 = vsel %vm432, %v411, 0
      %v503 = vsel %vm432, %v412, 0
      %v506 = vsel %vm432, %v413, 0
      %v509 = vsel %vm432, %v414, 0
      %v512 = vsel %vm432, %v415, 0
      %v515 = vsel %vm432, %v416, 0
      %v518 = vsel %vm432, %v417, 0
      %v521 = vsel %vm432, %v418, 0
      %v524 = vsel %vm432, %v419, 0
      %v527 = vsel %vm432, %v420, 0
      %vm529 = vcmask 1042432
      %v531 = vsel %vm529, %v424, 0
      %533 = vmatprep.subr.mxu0 0.0
      %534 = vmatpush1.msra.mxu0 %v421
      %535 = vmatprep.subr.mxu0 0.0
      %536 = vmatpush1.msra.mxu0 %v422
      %537 = vmatprep.subr.mxu0 0.0
      %538 = vmatpush1.msra.mxu0 %v423
      %539 = vmatprep.subr.mxu0 0.0
      %540 = vmatpush1.msra.mxu0 %v531
      %541 = vmatprep.subr.mxu0 0.0
      %542 = vmatpush1.msra.mxu0 0.0
      %543 = vmatprep.subr.mxu0 0.0
      %544 = vmatpush1.msra.mxu0 0.0
      %545 = vmatprep.subr.mxu0 0.0
      %546 = vmatpush1.msra.mxu0 0.0
      %547 = vmatprep.subr.mxu0 0.0
      %548 = vmatpush1.msra.mxu0 0.0
      %549 = vmatprep.subr.mxu0 0.0
      %550 = vmatpush1.msra.mxu0 0.0
      %551 = vmatprep.subr.mxu0 0.0
      %552 = vmatpush1.msra.mxu0 0.0
      %553 = vmatprep.subr.mxu0 0.0
      %554 = vmatpush1.msra.mxu0 0.0
      %555 = vmatprep.subr.mxu0 0.0
      %556 = vmatpush1.msra.mxu0 0.0
      %557 = vmatprep.subr.mxu0 0.0
      %558 = vmatpush1.msra.mxu0 0.0
      %559 = vmatprep.subr.mxu0 0.0
      %560 = vmatpush1.msra.mxu0 0.0
      %561 = vmatprep.subr.mxu0 0.0
      %562 = vmatpush1.msra.mxu0 0.0
      %563 = vmatprep.subr.mxu0 0.0
      %564 = vmatpush1.msra.mxu0 0.0
      %565 = vmatprep.subr.mxu0 0.0
      %566 = vmatpush1.msra.mxu0 0.0
      %567 = vmatprep.subr.mxu0 0.0
      %568 = vmatpush1.msra.mxu0 0.0
      %569 = vmatprep.subr.mxu0 0.0
      %570 = vmatpush1.msra.mxu0 0.0
      %571 = vmatprep.subr.mxu0 0.0
      %572 = vmatpush1.msra.mxu0 0.0
      %573 = vmatprep.subr.mxu0 0.0
      %574 = vmatpush1.msra.mxu0 0.0
      %575 = vmatprep.subr.mxu0 0.0
      %576 = vmatpush1.msra.mxu0 0.0
      %577 = vmatprep.subr.mxu0 0.0
      %578 = vmatpush1.msra.mxu0 0.0
      %579 = vmatprep.subr.mxu0 0.0
      %580 = vmatpush1.msra.mxu0 0.0
      %581 = vmatprep.subr.mxu0 0.0
      %582 = vmatpush1.msra.mxu0 0.0
      %583 = vmatprep.subr.mxu0 0.0
      %584 = vmatpush1.msra.mxu0 0.0
      %585 = vmatprep.subr.mxu0 0.0
      %586 = vmatpush1.msra.mxu0 0.0
      %587 = vmatprep.subr.mxu0 0.0
      %588 = vmatpush1.msra.mxu0 0.0
      %589 = vmatprep.subr.mxu0 0.0
      %590 = vmatpush1.msra.mxu0 0.0
      %591 = vmatprep.subr.mxu0 0.0
      %592 = vmatpush1.msra.mxu0 0.0
      %593 = vmatprep.subr.mxu0 0.0
      %594 = vmatpush1.msra.mxu0 0.0
      %595 = vmatprep.subr.mxu0 0.0
      %596 = vmatpush1.msra.mxu0 0.0
      %597 = vmatprep.mubr.f32.mxu0 0.0
      %598 = vmatmul.mubr.f32.gmra.mrb[0].mxu0 %v434
      %v599 = vpop.f32.mrb[0].mxu0
      %v600 = vadd.f32 %v430, %v599
      %v601 = vpop.f32.mrb[0].mxu0
      %602 = vmatprep.mubr.f32.mxu0 0.0
      %603 = vmatmul.mubr.f32.gmra.mrb[0].mxu0 %v437
      %v604 = vpop.f32.mrb[0].mxu0
      %v605 = vadd.f32 %v430, %v604
      %v606 = vpop.f32.mrb[0].mxu0
      %607 = vmatprep.mubr.f32.mxu0 0.0
      %608 = vmatmul.mubr.f32.gmra.mrb[0].mxu0 %v440
      %v609 = vpop.f32.mrb[0].mxu0
      %v610 = vadd.f32 %v430, %v609
      %v611 = vpop.f32.mrb[0].mxu0
      %612 = vmatprep.mubr.f32.mxu0 0.0
      %613 = vmatmul.mubr.f32.gmra.mrb[0].mxu0 %v443
      %v614 = vpop.f32.mrb[0].mxu0
      %v615 = vadd.f32 %v430, %v614
      %v616 = vpop.f32.mrb[0].mxu0
      %617 = vmatprep.mubr.f32.mxu0 0.0
      %618 = vmatmul.mubr.f32.gmra.mrb[0].mxu0 %v446
      %v619 = vpop.f32.mrb[0].mxu0
      %v620 = vadd.f32 %v430, %v619
      %v621 = vpop.f32.mrb[0].mxu0
      %622 = vmatprep.mubr.f32.mxu0 0.0
      %623 = vmatmul.mubr.f32.gmra.mrb[0].mxu0 %v449
      %v624 = vpop.f32.mrb[0].mxu0
      %v625 = vadd.f32 %v430, %v624
      %v626 = vpop.f32.mrb[0].mxu0
      %627 = vmatprep.mubr.f32.mxu0 0.0
      %628 = vmatmul.mubr.f32.gmra.mrb[0].mxu0 %v452
      %v629 = vpop.f32.mrb[0].mxu0
      %v630 = vadd.f32 %v430, %v629
      %v631 = vpop.f32.mrb[0].mxu0
      %632 = vmatprep.mubr.f32.mxu0 0.0
      %633 = vmatmul.mubr.f32.gmra.mrb[0].mxu0 %v455
      %v634 = vpop.f32.mrb[0].mxu0
      %v635 = vadd.f32 %v430, %v634
      %v636 = vpop.f32.mrb[0].mxu0
      %637 = vmatprep.mubr.f32.mxu0 0.0
      %638 = vmatmul.mubr.f32.gmra.mrb[0].mxu0 %v458
      %v639 = vpop.f32.mrb[0].mxu0
      %v640 = vadd.f32 %v430, %v639
      %v641 = vpop.f32.mrb[0].mxu0
      %642 = vmatprep.mubr.f32.mxu0 0.0
      %643 = vmatmul.mubr.f32.gmra.mrb[0].mxu0 %v461
      %v644 = vpop.f32.mrb[0].mxu0
      %v645 = vadd.f32 %v430, %v644
      %v646 = vpop.f32.mrb[0].mxu0
      %647 = vmatprep.mubr.f32.mxu0 0.0
      %648 = vmatmul.mubr.f32.gmra.mrb[0].mxu0 %v464
      %v649 = vpop.f32.mrb[0].mxu0
      %v650 = vadd.f32 %v430, %v649
      %v651 = vpop.f32.mrb[0].mxu0
      %652 = vmatprep.mubr.f32.mxu0 0.0
      %653 = vmatmul.mubr.f32.gmra.mrb[0].mxu0 %v467
      %v654 = vpop.f32.mrb[0].mxu0
      %v655 = vadd.f32 %v430, %v654
      %v656 = vpop.f32.mrb[0].mxu0
      %657 = vmatprep.mubr.f32.mxu0 0.0
      %658 = vmatmul.mubr.f32.gmra.mrb[0].mxu0 %v470
      %v659 = vpop.f32.mrb[0].mxu0
      %v660 = vadd.f32 %v430, %v659
      %v661 = vpop.f32.mrb[0].mxu0
      %662 = vmatprep.mubr.f32.mxu0 0.0
      %663 = vmatmul.mubr.f32.gmra.mrb[0].mxu0 %v473
      %v664 = vpop.f32.mrb[0].mxu0
      %v665 = vadd.f32 %v430, %v664
      %v666 = vpop.f32.mrb[0].mxu0
      %667 = vmatprep.mubr.f32.mxu0 0.0
      %668 = vmatmul.mubr.f32.gmra.mrb[0].mxu0 %v476
      %v669 = vpop.f32.mrb[0].mxu0
      %v670 = vadd.f32 %v430, %v669
      %v671 = vpop.f32.mrb[0].mxu0
      %672 = vmatprep.mubr.f32.mxu0 0.0
      %673 = vmatmul.mubr.f32.gmra.mrb[0].mxu0 %v479
      %v674 = vpop.f32.mrb[0].mxu0
      %v675 = vadd.f32 %v430, %v674
      %v676 = vpop.f32.mrb[0].mxu0
      %677 = vmatprep.mubr.f32.mxu0 0.0
      %678 = vmatmul.mubr.f32.gmra.mrb[0].mxu0 %v482
      %v679 = vpop.f32.mrb[0].mxu0
      %v680 = vadd.f32 %v430, %v679
      %v681 = vpop.f32.mrb[0].mxu0
      %682 = vmatprep.mubr.f32.mxu0 0.0
      %683 = vmatmul.mubr.f32.gmra.mrb[0].mxu0 %v485
      %v684 = vpop.f32.mrb[0].mxu0
      %v685 = vadd.f32 %v430, %v684
      %v686 = vpop.f32.mrb[0].mxu0
      %687 = vmatprep.mubr.f32.mxu0 0.0
      %688 = vmatmul.mubr.f32.gmra.mrb[0].mxu0 %v488
      %v689 = vpop.f32.mrb[0].mxu0
      %v690 = vadd.f32 %v430, %v689
      %v691 = vpop.f32.mrb[0].mxu0
      %692 = vmatprep.mubr.f32.mxu0 0.0
      %693 = vmatmul.mubr.f32.gmra.mrb[0].mxu0 %v491
      %v694 = vpop.f32.mrb[0].mxu0
      %v695 = vadd.f32 %v430, %v694
      %v696 = vpop.f32.mrb[0].mxu0
      %697 = vmatprep.mubr.f32.mxu0 0.0
      %698 = vmatmul.mubr.f32.gmra.mrb[0].mxu0 %v494
      %v699 = vpop.f32.mrb[0].mxu0
      %v700 = vadd.f32 %v430, %v699
      %v701 = vpop.f32.mrb[0].mxu0
      %702 = vmatprep.mubr.f32.mxu0 0.0
      %703 = vmatmul.mubr.f32.gmra.mrb[0].mxu0 %v497
      %v704 = vpop.f32.mrb[0].mxu0
      %v705 = vadd.f32 %v430, %v704
      %v706 = vpop.f32.mrb[0].mxu0
      %707 = vmatprep.mubr.f32.mxu0 0.0
      %708 = vmatmul.mubr.f32.gmra.mrb[0].mxu0 %v500
      %v709 = vpop.f32.mrb[0].mxu0
      %v710 = vadd.f32 %v430, %v709
      %v711 = vpop.f32.mrb[0].mxu0
      %712 = vmatprep.mubr.f32.mxu0 0.0
      %713 = vmatmul.mubr.f32.gmra.mrb[0].mxu0 %v503
      %v714 = vpop.f32.mrb[0].mxu0
      %v715 = vadd.f32 %v430, %v714
      %v716 = vpop.f32.mrb[0].mxu0
      %717 = vmatprep.mubr.f32.mxu0 0.0
      %718 = vmatmul.mubr.f32.gmra.mrb[0].mxu0 %v506
      %v719 = vpop.f32.mrb[0].mxu0
      %v720 = vadd.f32 %v430, %v719
      %v721 = vpop.f32.mrb[0].mxu0
      %722 = vmatprep.mubr.f32.mxu0 0.0
      %723 = vmatmul.mubr.f32.gmra.mrb[0].mxu0 %v509
      %v724 = vpop.f32.mrb[0].mxu0
      %v725 = vadd.f32 %v430, %v724
      %v726 = vpop.f32.mrb[0].mxu0
      %727 = vmatprep.mubr.f32.mxu0 0.0
      %728 = vmatmul.mubr.f32.gmra.mrb[0].mxu0 %v512
      %v729 = vpop.f32.mrb[0].mxu0
      %v730 = vadd.f32 %v430, %v729
      %v731 = vpop.f32.mrb[0].mxu0
      %732 = vmatprep.mubr.f32.mxu0 0.0
      %733 = vmatmul.mubr.f32.gmra.mrb[0].mxu0 %v515
      %v734 = vpop.f32.mrb[0].mxu0
      %v735 = vadd.f32 %v430, %v734
      %v736 = vpop.f32.mrb[0].mxu0
      %737 = vmatprep.mubr.f32.mxu0 0.0
      %738 = vmatmul.mubr.f32.gmra.mrb[0].mxu0 %v518
      %v739 = vpop.f32.mrb[0].mxu0
      %v740 = vadd.f32 %v430, %v739
      %v741 = vpop.f32.mrb[0].mxu0
      %742 = vmatprep.mubr.f32.mxu0 0.0
      %743 = vmatmul.mubr.f32.gmra.mrb[0].mxu0 %v521
      %v744 = vpop.f32.mrb[0].mxu0
      %v745 = vadd.f32 %v430, %v744
      %v746 = vpop.f32.mrb[0].mxu0
      %747 = vmatprep.mubr.f32.mxu0 0.0
      %748 = vmatmul.mubr.f32.gmra.mrb[0].mxu0 %v524
      %v749 = vpop.f32.mrb[0].mxu0
      %v750 = vadd.f32 %v430, %v749
      %v751 = vpop.f32.mrb[0].mxu0
      %752 = vmatprep.mubr.f32.mxu0 0.0
      %753 = vmatmul.mubr.f32.gmra.mrb[0].mxu0 %v527
      %v754 = vpop.f32.mrb[0].mxu0
      %v755 = vadd.f32 %v430, %v754
      %v756 = vpop.f32.mrb[0].mxu0
      %757 = vdwg.mxu0
      %vm758 = vcmp.ge.f32.partialorder %v600, 0.0
      %vm759 = vcmp.ge.f32.partialorder %v605, 0.0
      %vm760 = vcmp.ge.f32.partialorder %v610, 0.0
      %vm761 = vcmp.ge.f32.partialorder %v615, 0.0
      %vm762 = vcmp.ge.f32.partialorder %v620, 0.0
      %vm763 = vcmp.ge.f32.partialorder %v625, 0.0
      %vm764 = vcmp.ge.f32.partialorder %v630, 0.0
      %vm765 = vcmp.ge.f32.partialorder %v635, 0.0
      %vm766 = vcmp.ge.f32.partialorder %v640, 0.0
      %vm767 = vcmp.ge.f32.partialorder %v645, 0.0
      %vm768 = vcmp.ge.f32.partialorder %v650, 0.0
      %vm769 = vcmp.ge.f32.partialorder %v655, 0.0
      %vm770 = vcmp.ge.f32.partialorder %v660, 0.0
      %vm771 = vcmp.ge.f32.partialorder %v665, 0.0
      %vm772 = vcmp.ge.f32.partialorder %v670, 0.0
      %vm773 = vcmp.ge.f32.partialorder %v675, 0.0
      %vm774 = vcmp.ge.f32.partialorder %v680, 0.0
      %vm775 = vcmp.ge.f32.partialorder %v685, 0.0
      %vm776 = vcmp.ge.f32.partialorder %v690, 0.0
      %vm777 = vcmp.ge.f32.partialorder %v695, 0.0
      %vm778 = vcmp.ge.f32.partialorder %v700, 0.0
      %vm779 = vcmp.ge.f32.partialorder %v705, 0.0
      %vm780 = vcmp.ge.f32.partialorder %v710, 0.0
      %vm781 = vcmp.ge.f32.partialorder %v715, 0.0
      %vm782 = vcmp.ge.f32.partialorder %v720, 0.0
      %vm783 = vcmp.ge.f32.partialorder %v725, 0.0
      %vm784 = vcmp.ge.f32.partialorder %v730, 0.0
      %vm785 = vcmp.ge.f32.partialorder %v735, 0.0
      %vm786 = vcmp.ge.f32.partialorder %v740, 0.0
      %vm787 = vcmp.ge.f32.partialorder %v745, 0.0
      %vm788 = vcmp.ge.f32.partialorder %v750, 0.0
      %vm789 = vcmp.ge.f32.partialorder %v755, 0.0
      %v790 = vmul.f32 %v600, 0.2
      %v791 = vmul.f32 %v605, 0.2
      %v792 = vmul.f32 %v610, 0.2
      %v793 = vmul.f32 %v615, 0.2
      %v794 = vmul.f32 %v620, 0.2
      %v795 = vmul.f32 %v625, 0.2
      %v796 = vmul.f32 %v630, 0.2
      %v797 = vmul.f32 %v635, 0.2
      %v798 = vmul.f32 %v640, 0.2
      %v799 = vmul.f32 %v645, 0.2
      %v800 = vmul.f32 %v650, 0.2
      %v801 = vmul.f32 %v655, 0.2
      %v802 = vmul.f32 %v660, 0.2
      %v803 = vmul.f32 %v665, 0.2
      %v804 = vmul.f32 %v670, 0.2
      %v805 = vmul.f32 %v675, 0.2
      %v806 = vmul.f32 %v680, 0.2
      %v807 = vmul.f32 %v685, 0.2
      %v808 = vmul.f32 %v690, 0.2
      %v809 = vmul.f32 %v695, 0.2
      %v810 = vmul.f32 %v700, 0.2
      %v811 = vmul.f32 %v705, 0.2
      %v812 = vmul.f32 %v710, 0.2
      %v813 = vmul.f32 %v715, 0.2
      %v814 = vmul.f32 %v720, 0.2
      %v815 = vmul.f32 %v725, 0.2
      %v816 = vmul.f32 %v730, 0.2
      %v817 = vmul.f32 %v735, 0.2
      %v818 = vmul.f32 %v740, 0.2
      %v819 = vmul.f32 %v745, 0.2
      %v820 = vmul.f32 %v750, 0.2
      %v821 = vmul.f32 %v755, 0.2
      %v822 = vsel %vm758, %v600, %v790
      %v823 = vsel %vm759, %v605, %v791
      %v824 = vsel %vm760, %v610, %v792
      %v825 = vsel %vm761, %v615, %v793
      %v826 = vsel %vm762, %v620, %v794
      %v827 = vsel %vm763, %v625, %v795
      %v828 = vsel %vm764, %v630, %v796
      %v829 = vsel %vm765, %v635, %v797
      %v830 = vsel %vm766, %v640, %v798
      %v831 = vsel %vm767, %v645, %v799
      %v832 = vsel %vm768, %v650, %v800
      %v833 = vsel %vm769, %v655, %v801
      %v834 = vsel %vm770, %v660, %v802
      %v835 = vsel %vm771, %v665, %v803
      %v836 = vsel %vm772, %v670, %v804
      %v837 = vsel %vm773, %v675, %v805
      %v838 = vsel %vm774, %v680, %v806
      %v839 = vsel %vm775, %v685, %v807
      %v840 = vsel %vm776, %v690, %v808
      %v841 = vsel %vm777, %v695, %v809
      %v842 = vsel %vm778, %v700, %v810
      %v843 = vsel %vm779, %v705, %v811
      %v844 = vsel %vm780, %v710, %v812
      %v845 = vsel %vm781, %v715, %v813
      %v846 = vsel %vm782, %v720, %v814
      %v847 = vsel %vm783, %v725, %v815
      %v848 = vsel %vm784, %v730, %v816
      %v849 = vsel %vm785, %v735, %v817
      %v850 = vsel %vm786, %v740, %v818
      %v851 = vsel %vm787, %v745, %v819
      %v852 = vsel %vm788, %v750, %v820
      %v853 = vsel %vm789, %v755, %v821
      %v854 = vld [vmem:[%s3] sm:$0xff]
      %v855 = vld [vmem:[%s3 + $0x8] sm:$0xff]
      %v856 = vld [vmem:[%s3 + $0x10] sm:$0xff]
      %v857 = vld [vmem:[%s3 + $0x18] sm:$0xff]
      %v858 = vld [vmem:[%s3 + $0x20] sm:$0xff]
      %v859 = vld [vmem:[%s3 + $0x28] sm:$0xff]
      %v860 = vld [vmem:[%s3 + $0x30] sm:$0xff]
      %v861 = vld [vmem:[%s3 + $0x38] sm:$0xff]
      %v862 = vld [vmem:[%s3 + $0x40] sm:$0xff]
      %v863 = vld [vmem:[%s3 + $0x48] sm:$0xff]
      %v864 = vld [vmem:[%s3 + $0x50] sm:$0xff]
      %v865 = vld [vmem:[%s3 + $0x58] sm:$0xff]
      %v866 = vld [vmem:[%s3 + $0x60] sm:$0xff]
      %v867 = vld [vmem:[%s3 + $0x68] sm:$0xff]
      %v868 = vld [vmem:[%s3 + $0x70] sm:$0xff]
      %v869 = vld [vmem:[%s3 + $0x78] sm:$0xff]
      %v870 = vld [vmem:[%s3 + $0x80] sm:$0xff]
      %v871 = vld [vmem:[%s3 + $0x88] sm:$0xff]
      %v872 = vld [vmem:[%s3 + $0x90] sm:$0xff]
      %v873 = vld [vmem:[%s3 + $0x98] sm:$0xff]
      %v874 = vld [vmem:[%s3 + $0xa0] sm:$0xff]
      %v875 = vld [vmem:[%s3 + $0xa8] sm:$0xff]
      %v876 = vld [vmem:[%s3 + $0xb0] sm:$0xff]
      %v877 = vld [vmem:[%s3 + $0xb8] sm:$0xff]
      %v878 = vld [vmem:[%s3 + $0xc0] sm:$0xff]
      %v879 = vld [vmem:[%s3 + $0xc8] sm:$0xff]
      %v880 = vld [vmem:[%s3 + $0xd0] sm:$0xff]
      %v881 = vld [vmem:[%s3 + $0xd8] sm:$0xff]
      %v882 = vld [vmem:[%s3 + $0xe0] sm:$0xff]
      %v883 = vld [vmem:[%s3 + $0xe8] sm:$0xff]
      %v884 = vld [vmem:[%s3 + $0xf0] sm:$0xff]
      %v885 = vld [vmem:[%s3 + $0xf8] sm:$0xff]
      %v886 = vld [vmem:[%s3 + $0x100] sm:$0xff]
      %v887 = vld [vmem:[%s3 + $0x108] sm:$0xff]
      %v888 = vld [vmem:[%s3 + $0x110] sm:$0xff]
      %v889 = vld [vmem:[%s3 + $0x118] sm:$0xff]
      %v890 = vld [vmem:[%s3 + $0x120] sm:$0xff]
      %v891 = vld [vmem:[%s3 + $0x128] sm:$0xff]
      %v892 = vld [vmem:[%s3 + $0x130] sm:$0xff]
      %v893 = vld [vmem:[%s3 + $0x138] sm:$0xff]
      %v894 = vld [vmem:[%s3 + $0x140] sm:$0xff]
      %v895 = vld [vmem:[%s3 + $0x148] sm:$0xff]
      %v896 = vld [vmem:[%s3 + $0x150] sm:$0xff]
      %v897 = vld [vmem:[%s3 + $0x158] sm:$0xff]
      %v898 = vld [vmem:[%s3 + $0x160] sm:$0xff]
      %v899 = vld [vmem:[%s3 + $0x168] sm:$0xff]
      %v900 = vld [vmem:[%s3 + $0x170] sm:$0xff]
      %v901 = vld [vmem:[%s3 + $0x178] sm:$0xff]
      %v902 = vld [vmem:[%s3 + $0x180] sm:$0xff]
      %v903 = vld [vmem:[%s3 + $0x188] sm:$0xff]
      %v904 = vld [vmem:[%s3 + $0x190] sm:$0xff]
      %v905 = vld [vmem:[%s3 + $0x198] sm:$0xff]
      %v906 = vld [vmem:[%s3 + $0x1a0] sm:$0xff]
      %v907 = vld [vmem:[%s3 + $0x1a8] sm:$0xff]
      %v908 = vld [vmem:[%s3 + $0x1b0] sm:$0xff]
      %v909 = vld [vmem:[%s3 + $0x1b8] sm:$0xff]
      %v910 = vld [vmem:[%s3 + $0x1c0] sm:$0xff]
      %v911 = vld [vmem:[%s3 + $0x1c8] sm:$0xff]
      %v912 = vld [vmem:[%s3 + $0x1d0] sm:$0xff]
      %v913 = vld [vmem:[%s3 + $0x1d8] sm:$0xff]
      %v914 = vld [vmem:[%s3 + $0x1e0] sm:$0xff]
      %v915 = vld [vmem:[%s3 + $0x1e8] sm:$0xff]
      %v916 = vld [vmem:[%s3 + $0x1f0] sm:$0xff]
      %v917 = vld [vmem:[%s3 + $0x1f8] sm:$0xff]
      %v918 = vld [vmem:[%s3 + $0x200] sm:$0xff]
      %v919 = vld [vmem:[%s3 + $0x208] sm:$0xff]
      %v920 = vld [vmem:[%s3 + $0x210] sm:$0xff]
      %v921 = vld [vmem:[%s3 + $0x218] sm:$0xff]
      %v922 = vld [vmem:[%s3 + $0x220] sm:$0xff]
      %v923 = vld [vmem:[%s3 + $0x228] sm:$0xff]
      %v924 = vld [vmem:[%s3 + $0x230] sm:$0xff]
      %v925 = vld [vmem:[%s3 + $0x238] sm:$0xff]
      %v926 = vld [vmem:[%s3 + $0x240] sm:$0xff]
      %v927 = vld [vmem:[%s3 + $0x248] sm:$0xff]
      %v928 = vld [vmem:[%s3 + $0x250] sm:$0xff]
      %v929 = vld [vmem:[%s3 + $0x258] sm:$0xff]
      %v930 = vld [vmem:[%s3 + $0x260] sm:$0xff]
      %v931 = vld [vmem:[%s3 + $0x268] sm:$0xff]
      %v932 = vld [vmem:[%s3 + $0x270] sm:$0xff]
      %v933 = vld [vmem:[%s3 + $0x278] sm:$0xff]
      %v934 = vld [vmem:[%s3 + $0x280] sm:$0xff]
      %v935 = vld [vmem:[%s3 + $0x288] sm:$0xff]
      %v936 = vld [vmem:[%s3 + $0x290] sm:$0xff]
      %v937 = vld [vmem:[%s3 + $0x298] sm:$0xff]
      %v938 = vld [vmem:[%s3 + $0x2a0] sm:$0xff]
      %v939 = vld [vmem:[%s3 + $0x2a8] sm:$0xff]
      %v940 = vld [vmem:[%s3 + $0x2b0] sm:$0xff]
      %v941 = vld [vmem:[%s3 + $0x2b8] sm:$0xff]
      %v942 = vld [vmem:[%s3 + $0x2c0] sm:$0xff]
      %v943 = vld [vmem:[%s3 + $0x2c8] sm:$0xff]
      %v944 = vld [vmem:[%s3 + $0x2d0] sm:$0xff]
      %v945 = vld [vmem:[%s3 + $0x2d8] sm:$0xff]
      %v946 = vld [vmem:[%s3 + $0x2e0] sm:$0xff]
      %v947 = vld [vmem:[%s3 + $0x2e8] sm:$0xff]
      %v948 = vld [vmem:[%s3 + $0x2f0] sm:$0xff]
      %v949 = vld [vmem:[%s3 + $0x2f8] sm:$0xff]
      %v950 = vld [vmem:[%s3 + $0x300] sm:$0xff]
      %v951 = vld [vmem:[%s3 + $0x308] sm:$0xff]
      %v952 = vld [vmem:[%s3 + $0x310] sm:$0xff]
      %v953 = vld [vmem:[%s3 + $0x318] sm:$0xff]
      %v954 = vld [vmem:[%s3 + $0x320] sm:$0xff]
      %v955 = vld [vmem:[%s3 + $0x328] sm:$0xff]
      %v956 = vld [vmem:[%s3 + $0x330] sm:$0xff]
      %v957 = vld [vmem:[%s3 + $0x338] sm:$0xff]
      %v958 = vld [vmem:[%s3 + $0x340] sm:$0xff]
      %v959 = vld [vmem:[%s3 + $0x348] sm:$0xff]
      %v960 = vld [vmem:[%s3 + $0x350] sm:$0xff]
      %v961 = vld [vmem:[%s3 + $0x358] sm:$0xff]
      %v962 = vld [vmem:[%s3 + $0x360] sm:$0xff]
      %v963 = vld [vmem:[%s3 + $0x368] sm:$0xff]
      %v964 = vld [vmem:[%s3 + $0x370] sm:$0xff]
      %v965 = vld [vmem:[%s3 + $0x378] sm:$0xff]
      %v966 = vld [vmem:[%s3 + $0x380] sm:$0xff]
      %v967 = vld [vmem:[%s3 + $0x388] sm:$0xff]
      %v968 = vld [vmem:[%s3 + $0x390] sm:$0xff]
      %v969 = vld [vmem:[%s3 + $0x398] sm:$0xff]
      %v970 = vld [vmem:[%s3 + $0x3a0] sm:$0xff]
      %v971 = vld [vmem:[%s3 + $0x3a8] sm:$0xff]
      %v972 = vld [vmem:[%s3 + $0x3b0] sm:$0xff]
      %v973 = vld [vmem:[%s3 + $0x3b8] sm:$0xff]
      %v974 = vld [vmem:[%s3 + $0x3c0] sm:$0xff]
      %v975 = vld [vmem:[%s3 + $0x3c8] sm:$0xff]
      %v976 = vld [vmem:[%s3 + $0x3d0] sm:$0xff]
      %v977 = vld [vmem:[%s3 + $0x3d8] sm:$0xff]
      %v978 = vld [vmem:[%s3 + $0x3e0] sm:$0xff]
      %v979 = vld [vmem:[%s3 + $0x3e8] sm:$0xff]
      %v980 = vld [vmem:[%s3 + $0x3f0] sm:$0xff]
      %v981 = vld [vmem:[%s3 + $0x3f8] sm:$0xff]
      %v982 = vld [vmem:[%s3 + $0x400] sm:$0xff]
      %v983 = vld [vmem:[%s3 + $0x408] sm:$0xff]
      %v984 = vld [vmem:[%s3 + $0x410] sm:$0xff]
      %v985 = vld [vmem:[%s3 + $0x418] sm:$0xff]
      %v986 = vld [vmem:[%s3 + $0x420] sm:$0xff]
      %v987 = vld [vmem:[%s3 + $0x428] sm:$0xff]
      %v988 = vld [vmem:[%s3 + $0x430] sm:$0xff]
      %v989 = vld [vmem:[%s3 + $0x438] sm:$0xff]
      %v990 = vld [vmem:[%s3 + $0x440] sm:$0xff]
      %v991 = vld [vmem:[%s3 + $0x448] sm:$0xff]
      %v992 = vld [vmem:[%s3 + $0x450] sm:$0xff]
      %v993 = vld [vmem:[%s3 + $0x458] sm:$0xff]
      %v994 = vld [vmem:[%s3 + $0x460] sm:$0xff]
      %v995 = vld [vmem:[%s3 + $0x468] sm:$0xff]
      %v996 = vld [vmem:[%s3 + $0x470] sm:$0xff]
      %v997 = vld [vmem:[%s3 + $0x478] sm:$0xff]
      %998 = vmatprep.subr.mxu0 0.0
      %999 = vmatpush1.msra.mxu0 %v822
      %1000 = vmatprep.subr.mxu0 0.0
      %1001 = vmatpush1.msra.mxu0 %v823
      %1002 = vmatprep.subr.mxu0 0.0
      %1003 = vmatpush1.msra.mxu0 %v824
      %1004 = vmatprep.subr.mxu0 0.0
      %1005 = vmatpush1.msra.mxu0 %v825
      %1006 = vmatprep.subr.mxu0 0.0
      %1007 = vmatpush1.msra.mxu0 %v826
      %1008 = vmatprep.subr.mxu0 0.0
      %1009 = vmatpush1.msra.mxu0 %v827
      %1010 = vmatprep.subr.mxu0 0.0
      %1011 = vmatpush1.msra.mxu0 %v828
      %1012 = vmatprep.subr.mxu0 0.0
      %1013 = vmatpush1.msra.mxu0 %v829
      %1014 = vmatprep.subr.mxu0 0.0
      %1015 = vmatpush1.msra.mxu0 %v830
      %1016 = vmatprep.subr.mxu0 0.0
      %1017 = vmatpush1.msra.mxu0 %v831
      %1018 = vmatprep.subr.mxu0 0.0
      %1019 = vmatpush1.msra.mxu0 %v832
      %1020 = vmatprep.subr.mxu0 0.0
      %1021 = vmatpush1.msra.mxu0 %v833
      %1022 = vmatprep.subr.mxu0 0.0
      %1023 = vmatpush1.msra.mxu0 %v834
      %1024 = vmatprep.subr.mxu0 0.0
      %1025 = vmatpush1.msra.mxu0 %v835
      %1026 = vmatprep.subr.mxu0 0.0
      %1027 = vmatpush1.msra.mxu0 %v836
      %1028 = vmatprep.subr.mxu0 0.0
      %1029 = vmatpush1.msra.mxu0 %v837
      %1030 = vmatprep.subr.mxu0 0.0
      %1031 = vmatpush1.msra.mxu0 %v838
      %1032 = vmatprep.subr.mxu0 0.0
      %1033 = vmatpush1.msra.mxu0 %v839
      %1034 = vmatprep.subr.mxu0 0.0
      %1035 = vmatpush1.msra.mxu0 %v840
      %1036 = vmatprep.subr.mxu0 0.0
      %1037 = vmatpush1.msra.mxu0 %v841
      %1038 = vmatprep.subr.mxu0 0.0
      %1039 = vmatpush1.msra.mxu0 %v842
      %1040 = vmatprep.subr.mxu0 0.0
      %1041 = vmatpush1.msra.mxu0 %v843
      %1042 = vmatprep.subr.mxu0 0.0
      %1043 = vmatpush1.msra.mxu0 %v844
      %1044 = vmatprep.subr.mxu0 0.0
      %1045 = vmatpush1.msra.mxu0 %v845
      %1046 = vmatprep.subr.mxu0 0.0
      %1047 = vmatpush1.msra.mxu0 %v846
      %1048 = vmatprep.subr.mxu0 0.0
      %1049 = vmatpush1.msra.mxu0 %v847
      %1050 = vmatprep.subr.mxu0 0.0
      %1051 = vmatpush1.msra.mxu0 %v848
      %1052 = vmatprep.subr.mxu0 0.0
      %1053 = vmatpush1.msra.mxu0 %v849
      %1054 = vmatprep.subr.mxu0 0.0
      %1055 = vmatpush1.msra.mxu0 %v850
      %1056 = vmatprep.subr.mxu0 0.0
      %1057 = vmatpush1.msra.mxu0 %v851
      %1058 = vmatprep.subr.mxu0 0.0
      %1059 = vmatpush1.msra.mxu0 %v852
      %1060 = vmatprep.subr.mxu0 0.0
      %1061 = vmatpush1.msra.mxu0 %v853
      %1062 = vmatprep.mubr.f32.mxu0 %v855
      %1063 = vmatmul.mubr.f32.gmra.mrb[0].mxu0 %v854
      %v1064 = vpop.f32.mrb[0].mxu0
      %v1065 = vadd.f32 0.0, %v1064
      %v1066 = vpop.f32.mrb[0].mxu0
      %1067 = vmatprep.mubr.f32.mxu0 %v857
      %1068 = vmatmul.mubr.f32.gmra.mrb[0].mxu0 %v856
      %v1069 = vpop.f32.mrb[0].mxu0
      %v1070 = vadd.f32 0.0, %v1069
      %v1071 = vpop.f32.mrb[0].mxu0
      %1072 = vmatprep.mubr.f32.mxu0 %v859
      %1073 = vmatmul.mubr.f32.gmra.mrb[0].mxu0 %v858
      %v1074 = vpop.f32.mrb[0].mxu0
      %v1075 = vadd.f32 0.0, %v1074
      %v1076 = vpop.f32.mrb[0].mxu0
      %1077 = vmatprep.mubr.f32.mxu0 %v861
      %1078 = vmatmul.mubr.f32.gmra.mrb[0].mxu0 %v860
      %v1079 = vpop.f32.mrb[0].mxu0
      %v1080 = vadd.f32 0.0, %v1079
      %v1081 = vpop.f32.mrb[0].mxu0
      %1082 = vmatprep.mubr.f32.mxu0 %v863
      %1083 = vmatmul.mubr.f32.gmra.mrb[0].mxu0 %v862
      %v1084 = vpop.f32.mrb[0].mxu0
      %v1085 = vadd.f32 0.0, %v1084
      %v1086 = vpop.f32.mrb[0].mxu0
      %1087 = vmatprep.mubr.f32.mxu0 %v865
      %1088 = vmatmul.mubr.f32.gmra.mrb[0].mxu0 %v864
      %v1089 = vpop.f32.mrb[0].mxu0
      %v1090 = vadd.f32 0.0, %v1089
      %v1091 = vpop.f32.mrb[0].mxu0
      %1092 = vmatprep.mubr.f32.mxu0 %v867
      %1093 = vmatmul.mubr.f32.gmra.mrb[0].mxu0 %v866
      %v1094 = vpop.f32.mrb[0].mxu0
      %v1095 = vadd.f32 0.0, %v1094
      %v1096 = vpop.f32.mrb[0].mxu0
      %1097 = vmatprep.mubr.f32.mxu0 %v869
      %1098 = vmatmul.mubr.f32.gmra.mrb[0].mxu0 %v868
      %v1099 = vpop.f32.mrb[0].mxu0
      %v1100 = vadd.f32 0.0, %v1099
      %v1101 = vpop.f32.mrb[0].mxu0
      %1102 = vmatprep.mubr.f32.mxu0 %v871
      %1103 = vmatmul.mubr.f32.gmra.mrb[0].mxu0 %v870
      %v1104 = vpop.f32.mrb[0].mxu0
      %v1105 = vadd.f32 0.0, %v1104
      %v1106 = vpop.f32.mrb[0].mxu0
      %1107 = vmatprep.mubr.f32.mxu0 %v873
      %1108 = vmatmul.mubr.f32.gmra.mrb[0].mxu0 %v872
      %v1109 = vpop.f32.mrb[0].mxu0
      %v1110 = vadd.f32 0.0, %v1109
      %v1111 = vpop.f32.mrb[0].mxu0
      %1112 = vmatprep.mubr.f32.mxu0 %v875
      %1113 = vmatmul.mubr.f32.gmra.mrb[0].mxu0 %v874
      %v1114 = vpop.f32.mrb[0].mxu0
      %v1115 = vadd.f32 0.0, %v1114
      %v1116 = vpop.f32.mrb[0].mxu0
      %1117 = vmatprep.mubr.f32.mxu0 %v877
      %1118 = vmatmul.mubr.f32.gmra.mrb[0].mxu0 %v876
      %v1119 = vpop.f32.mrb[0].mxu0
      %v1120 = vadd.f32 0.0, %v1119
      %v1121 = vpop.f32.mrb[0].mxu0
      %1122 = vmatprep.mubr.f32.mxu0 %v879
      %1123 = vmatmul.mubr.f32.gmra.mrb[0].mxu0 %v878
      %v1124 = vpop.f32.mrb[0].mxu0
      %v1125 = vadd.f32 0.0, %v1124
      %v1126 = vpop.f32.mrb[0].mxu0
      %1127 = vmatprep.mubr.f32.mxu0 %v881
      %1128 = vmatmul.mubr.f32.gmra.mrb[0].mxu0 %v880
      %v1129 = vpop.f32.mrb[0].mxu0
      %v1130 = vadd.f32 0.0, %v1129
      %v1131 = vpop.f32.mrb[0].mxu0
      %1132 = vmatprep.mubr.f32.mxu0 %v883
      %1133 = vmatmul.mubr.f32.gmra.mrb[0].mxu0 %v882
      %v1134 = vpop.f32.mrb[0].mxu0
      %v1135 = vadd.f32 0.0, %v1134
      %v1136 = vpop.f32.mrb[0].mxu0
      %1137 = vmatprep.mubr.f32.mxu0 %v885
      %1138 = vmatmul.mubr.f32.gmra.mrb[0].mxu0 %v884
      %v1139 = vpop.f32.mrb[0].mxu0
      %v1140 = vadd.f32 0.0, %v1139
      %v1141 = vpop.f32.mrb[0].mxu0
      %1142 = vmatprep.mubr.f32.mxu0 %v887
      %1143 = vmatmul.mubr.f32.gmra.mrb[0].mxu0 %v886
      %v1144 = vpop.f32.mrb[0].mxu0
      %v1145 = vadd.f32 0.0, %v1144
      %v1146 = vpop.f32.mrb[0].mxu0
      %1147 = vmatprep.mubr.f32.mxu0 %v889
      %1148 = vmatmul.mubr.f32.gmra.mrb[0].mxu0 %v888
      %v1149 = vpop.f32.mrb[0].mxu0
      %v1150 = vadd.f32 0.0, %v1149
      %v1151 = vpop.f32.mrb[0].mxu0
      %1152 = vmatprep.mubr.f32.mxu0 %v891
      %1153 = vmatmul.mubr.f32.gmra.mrb[0].mxu0 %v890
      %v1154 = vpop.f32.mrb[0].mxu0
      %v1155 = vadd.f32 0.0, %v1154
      %v1156 = vpop.f32.mrb[0].mxu0
      %1157 = vmatprep.mubr.f32.mxu0 %v893
      %1158 = vmatmul.mubr.f32.gmra.mrb[0].mxu0 %v892
      %v1159 = vpop.f32.mrb[0].mxu0
      %v1160 = vadd.f32 0.0, %v1159
      %v1161 = vpop.f32.mrb[0].mxu0
      %1162 = vmatprep.mubr.f32.mxu0 %v895
      %1163 = vmatmul.mubr.f32.gmra.mrb[0].mxu0 %v894
      %v1164 = vpop.f32.mrb[0].mxu0
      %v1165 = vadd.f32 0.0, %v1164
      %v1166 = vpop.f32.mrb[0].mxu0
      %1167 = vmatprep.mubr.f32.mxu0 %v897
      %1168 = vmatmul.mubr.f32.gmra.mrb[0].mxu0 %v896
      %v1169 = vpop.f32.mrb[0].mxu0
      %v1170 = vadd.f32 0.0, %v1169
      %v1171 = vpop.f32.mrb[0].mxu0
      %1172 = vmatprep.mubr.f32.mxu0 %v899
      %1173 = vmatmul.mubr.f32.gmra.mrb[0].mxu0 %v898
      %v1174 = vpop.f32.mrb[0].mxu0
      %v1175 = vadd.f32 0.0, %v1174
      %v1176 = vpop.f32.mrb[0].mxu0
      %1177 = vmatprep.mubr.f32.mxu0 %v901
      %1178 = vmatmul.mubr.f32.gmra.mrb[0].mxu0 %v900
      %v1179 = vpop.f32.mrb[0].mxu0
      %v1180 = vadd.f32 0.0, %v1179
      %v1181 = vpop.f32.mrb[0].mxu0
      %1182 = vmatprep.mubr.f32.mxu0 %v903
      %1183 = vmatmul.mubr.f32.gmra.mrb[0].mxu0 %v902
      %v1184 = vpop.f32.mrb[0].mxu0
      %v1185 = vadd.f32 0.0, %v1184
      %v1186 = vpop.f32.mrb[0].mxu0
      %1187 = vmatprep.mubr.f32.mxu0 %v905
      %1188 = vmatmul.mubr.f32.gmra.mrb[0].mxu0 %v904
      %v1189 = vpop.f32.mrb[0].mxu0
      %v1190 = vadd.f32 0.0, %v1189
      %v1191 = vpop.f32.mrb[0].mxu0
      %1192 = vmatprep.mubr.f32.mxu0 %v907
      %1193 = vmatmul.mubr.f32.gmra.mrb[0].mxu0 %v906
      %v1194 = vpop.f32.mrb[0].mxu0
      %v1195 = vadd.f32 0.0, %v1194
      %v1196 = vpop.f32.mrb[0].mxu0
      %1197 = vmatprep.mubr.f32.mxu0 %v909
      %1198 = vmatmul.mubr.f32.gmra.mrb[0].mxu0 %v908
      %v1199 = vpop.f32.mrb[0].mxu0
      %v1200 = vadd.f32 0.0, %v1199
      %v1201 = vpop.f32.mrb[0].mxu0
      %1202 = vmatprep.mubr.f32.mxu0 %v911
      %1203 = vmatmul.mubr.f32.gmra.mrb[0].mxu0 %v910
      %v1204 = vpop.f32.mrb[0].mxu0
      %v1205 = vadd.f32 0.0, %v1204
      %v1206 = vpop.f32.mrb[0].mxu0
      %1207 = vmatprep.mubr.f32.mxu0 %v913
      %1208 = vmatmul.mubr.f32.gmra.mrb[0].mxu0 %v912
      %v1209 = vpop.f32.mrb[0].mxu0
      %v1210 = vadd.f32 0.0, %v1209
      %v1211 = vpop.f32.mrb[0].mxu0
      %1212 = vmatprep.mubr.f32.mxu0 %v915
      %1213 = vmatmul.mubr.f32.gmra.mrb[0].mxu0 %v914
      %v1214 = vpop.f32.mrb[0].mxu0
      %v1215 = vadd.f32 0.0, %v1214
      %v1216 = vpop.f32.mrb[0].mxu0
      %1217 = vmatprep.mubr.f32.mxu0 %v917
      %1218 = vmatmul.mubr.f32.gmra.mrb[0].mxu0 %v916
      %v1219 = vpop.f32.mrb[0].mxu0
      %v1220 = vadd.f32 0.0, %v1219
      %v1221 = vpop.f32.mrb[0].mxu0
      %1222 = vmatprep.mubr.f32.mxu0 %v919
      %1223 = vmatmul.mubr.f32.gmra.mrb[0].mxu0 %v918
      %v1224 = vpop.f32.mrb[0].mxu0
      %v1225 = vadd.f32 0.0, %v1224
      %v1226 = vpop.f32.mrb[0].mxu0
      %1227 = vmatprep.mubr.f32.mxu0 %v921
      %1228 = vmatmul.mubr.f32.gmra.mrb[0].mxu0 %v920
      %v1229 = vpop.f32.mrb[0].mxu0
      %v1230 = vadd.f32 0.0, %v1229
      %v1231 = vpop.f32.mrb[0].mxu0
      %1232 = vmatprep.mubr.f32.mxu0 %v923
      %1233 = vmatmul.mubr.f32.gmra.mrb[0].mxu0 %v922
      %v1234 = vpop.f32.mrb[0].mxu0
      %v1235 = vadd.f32 0.0, %v1234
      %v1236 = vpop.f32.mrb[0].mxu0
      %1237 = vmatprep.mubr.f32.mxu0 %v925
      %1238 = vmatmul.mubr.f32.gmra.mrb[0].mxu0 %v924
      %v1239 = vpop.f32.mrb[0].mxu0
      %v1240 = vadd.f32 0.0, %v1239
      %v1241 = vpop.f32.mrb[0].mxu0
      %1242 = vmatprep.mubr.f32.mxu0 %v927
      %1243 = vmatmul.mubr.f32.gmra.mrb[0].mxu0 %v926
      %v1244 = vpop.f32.mrb[0].mxu0
      %v1245 = vadd.f32 0.0, %v1244
      %v1246 = vpop.f32.mrb[0].mxu0
      %1247 = vmatprep.mubr.f32.mxu0 %v929
      %1248 = vmatmul.mubr.f32.gmra.mrb[0].mxu0 %v928
      %v1249 = vpop.f32.mrb[0].mxu0
      %v1250 = vadd.f32 0.0, %v1249
      %v1251 = vpop.f32.mrb[0].mxu0
      %1252 = vmatprep.mubr.f32.mxu0 %v931
      %1253 = vmatmul.mubr.f32.gmra.mrb[0].mxu0 %v930
      %v1254 = vpop.f32.mrb[0].mxu0
      %v1255 = vadd.f32 0.0, %v1254
      %v1256 = vpop.f32.mrb[0].mxu0
      %1257 = vmatprep.mubr.f32.mxu0 %v933
      %1258 = vmatmul.mubr.f32.gmra.mrb[0].mxu0 %v932
      %v1259 = vpop.f32.mrb[0].mxu0
      %v1260 = vadd.f32 0.0, %v1259
      %v1261 = vpop.f32.mrb[0].mxu0
      %1262 = vmatprep.mubr.f32.mxu0 %v935
      %1263 = vmatmul.mubr.f32.gmra.mrb[0].mxu0 %v934
      %v1264 = vpop.f32.mrb[0].mxu0
      %v1265 = vadd.f32 0.0, %v1264
      %v1266 = vpop.f32.mrb[0].mxu0
      %1267 = vmatprep.mubr.f32.mxu0 %v937
      %1268 = vmatmul.mubr.f32.gmra.mrb[0].mxu0 %v936
      %v1269 = vpop.f32.mrb[0].mxu0
      %v1270 = vadd.f32 0.0, %v1269
      %v1271 = vpop.f32.mrb[0].mxu0
      %1272 = vmatprep.mubr.f32.mxu0 %v939
      %1273 = vmatmul.mubr.f32.gmra.mrb[0].mxu0 %v938
      %v1274 = vpop.f32.mrb[0].mxu0
      %v1275 = vadd.f32 0.0, %v1274
      %v1276 = vpop.f32.mrb[0].mxu0
      %1277 = vmatprep.mubr.f32.mxu0 %v941
      %1278 = vmatmul.mubr.f32.gmra.mrb[0].mxu0 %v940
      %v1279 = vpop.f32.mrb[0].mxu0
      %v1280 = vadd.f32 0.0, %v1279
      %v1281 = vpop.f32.mrb[0].mxu0
      %1282 = vmatprep.mubr.f32.mxu0 %v943
      %1283 = vmatmul.mubr.f32.gmra.mrb[0].mxu0 %v942
      %v1284 = vpop.f32.mrb[0].mxu0
      %v1285 = vadd.f32 0.0, %v1284
      %v1286 = vpop.f32.mrb[0].mxu0
      %1287 = vmatprep.mubr.f32.mxu0 %v945
      %1288 = vmatmul.mubr.f32.gmra.mrb[0].mxu0 %v944
      %v1289 = vpop.f32.mrb[0].mxu0
      %v1290 = vadd.f32 0.0, %v1289
      %v1291 = vpop.f32.mrb[0].mxu0
      %1292 = vmatprep.mubr.f32.mxu0 %v947
      %1293 = vmatmul.mubr.f32.gmra.mrb[0].mxu0 %v946
      %v1294 = vpop.f32.mrb[0].mxu0
      %v1295 = vadd.f32 0.0, %v1294
      %v1296 = vpop.f32.mrb[0].mxu0
      %1297 = vmatprep.mubr.f32.mxu0 %v949
      %1298 = vmatmul.mubr.f32.gmra.mrb[0].mxu0 %v948
      %v1299 = vpop.f32.mrb[0].mxu0
      %v1300 = vadd.f32 0.0, %v1299
      %v1301 = vpop.f32.mrb[0].mxu0
      %1302 = vmatprep.mubr.f32.mxu0 %v951
      %1303 = vmatmul.mubr.f32.gmra.mrb[0].mxu0 %v950
      %v1304 = vpop.f32.mrb[0].mxu0
      %v1305 = vadd.f32 0.0, %v1304
      %v1306 = vpop.f32.mrb[0].mxu0
      %1307 = vmatprep.mubr.f32.mxu0 %v953
      %1308 = vmatmul.mubr.f32.gmra.mrb[0].mxu0 %v952
      %v1309 = vpop.f32.mrb[0].mxu0
      %v1310 = vadd.f32 0.0, %v1309
      %v1311 = vpop.f32.mrb[0].mxu0
      %1312 = vmatprep.mubr.f32.mxu0 %v955
      %1313 = vmatmul.mubr.f32.gmra.mrb[0].mxu0 %v954
      %v1314 = vpop.f32.mrb[0].mxu0
      %v1315 = vadd.f32 0.0, %v1314
      %v1316 = vpop.f32.mrb[0].mxu0
      %1317 = vmatprep.mubr.f32.mxu0 %v957
      %1318 = vmatmul.mubr.f32.gmra.mrb[0].mxu0 %v956
      %v1319 = vpop.f32.mrb[0].mxu0
      %v1320 = vadd.f32 0.0, %v1319
      %v1321 = vpop.f32.mrb[0].mxu0
      %1322 = vmatprep.mubr.f32.mxu0 %v959
      %1323 = vmatmul.mubr.f32.gmra.mrb[0].mxu0 %v958
      %v1324 = vpop.f32.mrb[0].mxu0
      %v1325 = vadd.f32 0.0, %v1324
      %v1326 = vpop.f32.mrb[0].mxu0
      %1327 = vmatprep.mubr.f32.mxu0 %v961
      %1328 = vmatmul.mubr.f32.gmra.mrb[0].mxu0 %v960
      %v1329 = vpop.f32.mrb[0].mxu0
      %v1330 = vadd.f32 0.0, %v1329
      %v1331 = vpop.f32.mrb[0].mxu0
      %1332 = vmatprep.mubr.f32.mxu0 %v963
      %1333 = vmatmul.mubr.f32.gmra.mrb[0].mxu0 %v962
      %v1334 = vpop.f32.mrb[0].mxu0
      %v1335 = vadd.f32 0.0, %v1334
      %v1336 = vpop.f32.mrb[0].mxu0
      %1337 = vmatprep.mubr.f32.mxu0 %v965
      %1338 = vmatmul.mubr.f32.gmra.mrb[0].mxu0 %v964
      %v1339 = vpop.f32.mrb[0].mxu0
      %v1340 = vadd.f32 0.0, %v1339
      %v1341 = vpop.f32.mrb[0].mxu0
      %1342 = vmatprep.mubr.f32.mxu0 %v967
      %1343 = vmatmul.mubr.f32.gmra.mrb[0].mxu0 %v966
      %v1344 = vpop.f32.mrb[0].mxu0
      %v1345 = vadd.f32 0.0, %v1344
      %v1346 = vpop.f32.mrb[0].mxu0
      %1347 = vmatprep.mubr.f32.mxu0 %v969
      %1348 = vmatmul.mubr.f32.gmra.mrb[0].mxu0 %v968
      %v1349 = vpop.f32.mrb[0].mxu0
      %v1350 = vadd.f32 0.0, %v1349
      %v1351 = vpop.f32.mrb[0].mxu0
      %1352 = vmatprep.mubr.f32.mxu0 %v971
      %1353 = vmatmul.mubr.f32.gmra.mrb[0].mxu0 %v970
      %v1354 = vpop.f32.mrb[0].mxu0
      %v1355 = vadd.f32 0.0, %v1354
      %v1356 = vpop.f32.mrb[0].mxu0
      %1357 = vmatprep.mubr.f32.mxu0 %v973
      %1358 = vmatmul.mubr.f32.gmra.mrb[0].mxu0 %v972
      %v1359 = vpop.f32.mrb[0].mxu0
      %v1360 = vadd.f32 0.0, %v1359
      %v1361 = vpop.f32.mrb[0].mxu0
      %1362 = vmatprep.mubr.f32.mxu0 %v975
      %1363 = vmatmul.mubr.f32.gmra.mrb[0].mxu0 %v974
      %v1364 = vpop.f32.mrb[0].mxu0
      %v1365 = vadd.f32 0.0, %v1364
      %v1366 = vpop.f32.mrb[0].mxu0
      %1367 = vmatprep.mubr.f32.mxu0 %v977
      %1368 = vmatmul.mubr.f32.gmra.mrb[0].mxu0 %v976
      %v1369 = vpop.f32.mrb[0].mxu0
      %v1370 = vadd.f32 0.0, %v1369
      %v1371 = vpop.f32.mrb[0].mxu0
      %1372 = vmatprep.mubr.f32.mxu0 %v979
      %1373 = vmatmul.mubr.f32.gmra.mrb[0].mxu0 %v978
      %v1374 = vpop.f32.mrb[0].mxu0
      %v1375 = vadd.f32 0.0, %v1374
      %v1376 = vpop.f32.mrb[0].mxu0
      %1377 = vmatprep.mubr.f32.mxu0 %v981
      %1378 = vmatmul.mubr.f32.gmra.mrb[0].mxu0 %v980
      %v1379 = vpop.f32.mrb[0].mxu0
      %v1380 = vadd.f32 0.0, %v1379
      %v1381 = vpop.f32.mrb[0].mxu0
      %1382 = vmatprep.mubr.f32.mxu0 %v983
      %1383 = vmatmul.mubr.f32.gmra.mrb[0].mxu0 %v982
      %v1384 = vpop.f32.mrb[0].mxu0
      %v1385 = vadd.f32 0.0, %v1384
      %v1386 = vpop.f32.mrb[0].mxu0
      %1387 = vmatprep.mubr.f32.mxu0 %v985
      %1388 = vmatmul.mubr.f32.gmra.mrb[0].mxu0 %v984
      %v1389 = vpop.f32.mrb[0].mxu0
      %v1390 = vadd.f32 0.0, %v1389
      %v1391 = vpop.f32.mrb[0].mxu0
      %1392 = vmatprep.mubr.f32.mxu0 %v987
      %1393 = vmatmul.mubr.f32.gmra.mrb[0].mxu0 %v986
      %v1394 = vpop.f32.mrb[0].mxu0
      %v1395 = vadd.f32 0.0, %v1394
      %v1396 = vpop.f32.mrb[0].mxu0
      %1397 = vmatprep.mubr.f32.mxu0 %v989
      %1398 = vmatmul.mubr.f32.gmra.mrb[0].mxu0 %v988
      %v1399 = vpop.f32.mrb[0].mxu0
      %v1400 = vadd.f32 0.0, %v1399
      %v1401 = vpop.f32.mrb[0].mxu0
      %1402 = vmatprep.mubr.f32.mxu0 %v991
      %1403 = vmatmul.mubr.f32.gmra.mrb[0].mxu0 %v990
      %v1404 = vpop.f32.mrb[0].mxu0
      %v1405 = vadd.f32 0.0, %v1404
      %v1406 = vpop.f32.mrb[0].mxu0
      %1407 = vmatprep.mubr.f32.mxu0 %v993
      %1408 = vmatmul.mubr.f32.gmra.mrb[0].mxu0 %v992
      %v1409 = vpop.f32.mrb[0].mxu0
      %v1410 = vadd.f32 0.0, %v1409
      %v1411 = vpop.f32.mrb[0].mxu0
      %1412 = vmatprep.mubr.f32.mxu0 %v995
      %1413 = vmatmul.mubr.f32.gmra.mrb[0].mxu0 %v994
      %v1414 = vpop.f32.mrb[0].mxu0
      %v1415 = vadd.f32 0.0, %v1414
      %v1416 = vpop.f32.mrb[0].mxu0
      %1417 = vmatprep.mubr.f32.mxu0 %v997
      %1418 = vmatmul.mubr.f32.gmra.mrb[0].mxu0 %v996
      %v1419 = vpop.f32.mrb[0].mxu0
      %v1420 = vadd.f32 0.0, %v1419
      %v1421 = vpop.f32.mrb[0].mxu0
      %1422 = vdwg.mxu0
      %1431 = vrot.lane.b32.xlu0 %v1105, 8
      %v1432 = vpop.permute.xlu0 %1431
      %1433 = vrot.lane.b32.xlu0 %v1110, 8
      %v1434 = vpop.permute.xlu0 %1433
      %1435 = vrot.lane.b32.xlu0 %v1115, 8
      %v1436 = vpop.permute.xlu0 %1435
      %1437 = vrot.lane.b32.xlu0 %v1120, 8
      %v1438 = vpop.permute.xlu0 %1437
      %1439 = vrot.lane.b32.xlu0 %v1125, 8
      %v1440 = vpop.permute.xlu0 %1439
      %1441 = vrot.lane.b32.xlu0 %v1130, 8
      %v1442 = vpop.permute.xlu0 %1441
      %1443 = vrot.lane.b32.xlu0 %v1135, 8
      %v1444 = vpop.permute.xlu0 %1443
      %1445 = vrot.lane.b32.xlu0 %v1140, 8
      %v1446 = vpop.permute.xlu0 %1445
      %1463 = vrot.lane.b32.xlu0 %v1145, 16
      %v1464 = vpop.permute.xlu0 %1463
      %1465 = vrot.lane.b32.xlu0 %v1150, 16
      %v1466 = vpop.permute.xlu0 %1465
      %1467 = vrot.lane.b32.xlu0 %v1155, 16
      %v1468 = vpop.permute.xlu0 %1467
      %1469 = vrot.lane.b32.xlu0 %v1160, 16
      %v1470 = vpop.permute.xlu0 %1469
      %1471 = vrot.lane.b32.xlu0 %v1165, 16
      %v1472 = vpop.permute.xlu0 %1471
      %1473 = vrot.lane.b32.xlu0 %v1170, 16
      %v1474 = vpop.permute.xlu0 %1473
      %1475 = vrot.lane.b32.xlu0 %v1175, 16
      %v1476 = vpop.permute.xlu0 %1475
      %1477 = vrot.lane.b32.xlu0 %v1180, 16
      %v1478 = vpop.permute.xlu0 %1477
      %1495 = vrot.lane.b32.xlu0 %v1185, 24
      %v1496 = vpop.permute.xlu0 %1495
      %1497 = vrot.lane.b32.xlu0 %v1190, 24
      %v1498 = vpop.permute.xlu0 %1497
      %1499 = vrot.lane.b32.xlu0 %v1195, 24
      %v1500 = vpop.permute.xlu0 %1499
      %1501 = vrot.lane.b32.xlu0 %v1200, 24
      %v1502 = vpop.permute.xlu0 %1501
      %1503 = vrot.lane.b32.xlu0 %v1205, 24
      %v1504 = vpop.permute.xlu0 %1503
      %1505 = vrot.lane.b32.xlu0 %v1210, 24
      %v1506 = vpop.permute.xlu0 %1505
      %1507 = vrot.lane.b32.xlu0 %v1215, 24
      %v1508 = vpop.permute.xlu0 %1507
      %1509 = vrot.lane.b32.xlu0 %v1220, 24
      %v1510 = vpop.permute.xlu0 %1509
      %1527 = vrot.lane.b32.xlu0 %v1225, 32
      %v1528 = vpop.permute.xlu0 %1527
      %1529 = vrot.lane.b32.xlu0 %v1230, 32
      %v1530 = vpop.permute.xlu0 %1529
      %1531 = vrot.lane.b32.xlu0 %v1235, 32
      %v1532 = vpop.permute.xlu0 %1531
      %1533 = vrot.lane.b32.xlu0 %v1240, 32
      %v1534 = vpop.permute.xlu0 %1533
      %1535 = vrot.lane.b32.xlu0 %v1245, 32
      %v1536 = vpop.permute.xlu0 %1535
      %1537 = vrot.lane.b32.xlu0 %v1250, 32
      %v1538 = vpop.permute.xlu0 %1537
      %1539 = vrot.lane.b32.xlu0 %v1255, 32
      %v1540 = vpop.permute.xlu0 %1539
      %1541 = vrot.lane.b32.xlu0 %v1260, 32
      %v1542 = vpop.permute.xlu0 %1541
      %1559 = vrot.lane.b32.xlu0 %v1265, 40
      %v1560 = vpop.permute.xlu0 %1559
      %1561 = vrot.lane.b32.xlu0 %v1270, 40
      %v1562 = vpop.permute.xlu0 %1561
      %1563 = vrot.lane.b32.xlu0 %v1275, 40
      %v1564 = vpop.permute.xlu0 %1563
      %1565 = vrot.lane.b32.xlu0 %v1280, 40
      %v1566 = vpop.permute.xlu0 %1565
      %1567 = vrot.lane.b32.xlu0 %v1285, 40
      %v1568 = vpop.permute.xlu0 %1567
      %1569 = vrot.lane.b32.xlu0 %v1290, 40
      %v1570 = vpop.permute.xlu0 %1569
      %1571 = vrot.lane.b32.xlu0 %v1295, 40
      %v1572 = vpop.permute.xlu0 %1571
      %1573 = vrot.lane.b32.xlu0 %v1300, 40
      %v1574 = vpop.permute.xlu0 %1573
      %1591 = vrot.lane.b32.xlu0 %v1305, 48
      %v1592 = vpop.permute.xlu0 %1591
      %1593 = vrot.lane.b32.xlu0 %v1310, 48
      %v1594 = vpop.permute.xlu0 %1593
      %1595 = vrot.lane.b32.xlu0 %v1315, 48
      %v1596 = vpop.permute.xlu0 %1595
      %1597 = vrot.lane.b32.xlu0 %v1320, 48
      %v1598 = vpop.permute.xlu0 %1597
      %1599 = vrot.lane.b32.xlu0 %v1325, 48
      %v1600 = vpop.permute.xlu0 %1599
      %1601 = vrot.lane.b32.xlu0 %v1330, 48
      %v1602 = vpop.permute.xlu0 %1601
      %1603 = vrot.lane.b32.xlu0 %v1335, 48
      %v1604 = vpop.permute.xlu0 %1603
      %1605 = vrot.lane.b32.xlu0 %v1340, 48
      %v1606 = vpop.permute.xlu0 %1605
      %1623 = vrot.lane.b32.xlu0 %v1345, 56
      %v1624 = vpop.permute.xlu0 %1623
      %1625 = vrot.lane.b32.xlu0 %v1350, 56
      %v1626 = vpop.permute.xlu0 %1625
      %1627 = vrot.lane.b32.xlu0 %v1355, 56
      %v1628 = vpop.permute.xlu0 %1627
      %1629 = vrot.lane.b32.xlu0 %v1360, 56
      %v1630 = vpop.permute.xlu0 %1629
      %1631 = vrot.lane.b32.xlu0 %v1365, 56
      %v1632 = vpop.permute.xlu0 %1631
      %1633 = vrot.lane.b32.xlu0 %v1370, 56
      %v1634 = vpop.permute.xlu0 %1633
      %1635 = vrot.lane.b32.xlu0 %v1375, 56
      %v1636 = vpop.permute.xlu0 %1635
      %1637 = vrot.lane.b32.xlu0 %v1380, 56
      %v1638 = vpop.permute.xlu0 %1637
      %1655 = vrot.lane.b32.xlu0 %v1385, 64
      %v1656 = vpop.permute.xlu0 %1655
      %1657 = vrot.lane.b32.xlu0 %v1390, 64
      %v1658 = vpop.permute.xlu0 %1657
      %1659 = vrot.lane.b32.xlu0 %v1395, 64
      %v1660 = vpop.permute.xlu0 %1659
      %1661 = vrot.lane.b32.xlu0 %v1400, 64
      %v1662 = vpop.permute.xlu0 %1661
      %1663 = vrot.lane.b32.xlu0 %v1405, 64
      %v1664 = vpop.permute.xlu0 %1663
      %1665 = vrot.lane.b32.xlu0 %v1410, 64
      %v1666 = vpop.permute.xlu0 %1665
      %1667 = vrot.lane.b32.xlu0 %v1415, 64
      %v1668 = vpop.permute.xlu0 %1667
      %1669 = vrot.lane.b32.xlu0 %v1420, 64
      %v1670 = vpop.permute.xlu0 %1669
      %vm1679 = vcmask 64512
      %v1680 = vsel %vm1679, %v1065, %v1432
      %v1681 = vsel %vm1679, %v1070, %v1434
      %v1682 = vsel %vm1679, %v1075, %v1436
      %v1683 = vsel %vm1679, %v1080, %v1438
      %v1684 = vsel %vm1679, %v1085, %v1440
      %v1685 = vsel %vm1679, %v1090, %v1442
      %v1686 = vsel %vm1679, %v1095, %v1444
      %v1687 = vsel %vm1679, %v1100, %v1446
      %vm1688 = vcmask 130048
      %v1689 = vsel %vm1688, %v1680, %v1464
      %v1690 = vsel %vm1688, %v1681, %v1466
      %v1691 = vsel %vm1688, %v1682, %v1468
      %v1692 = vsel %vm1688, %v1683, %v1470
      %v1693 = vsel %vm1688, %v1684, %v1472
      %v1694 = vsel %vm1688, %v1685, %v1474
      %v1695 = vsel %vm1688, %v1686, %v1476
      %v1696 = vsel %vm1688, %v1687, %v1478
      %vm1697 = vcmask 195584
      %v1698 = vsel %vm1697, %v1689, %v1496
      %v1699 = vsel %vm1697, %v1690, %v1498
      %v1700 = vsel %vm1697, %v1691, %v1500
      %v1701 = vsel %vm1697, %v1692, %v1502
      %v1702 = vsel %vm1697, %v1693, %v1504
      %v1703 = vsel %vm1697, %v1694, %v1506
      %v1704 = vsel %vm1697, %v1695, %v1508
      %v1705 = vsel %vm1697, %v1696, %v1510
      %vm1706 = vcmask 261120
      %v1707 = vsel %vm1706, %v1698, %v1528
      %v1708 = vsel %vm1706, %v1699, %v1530
      %v1709 = vsel %vm1706, %v1700, %v1532
      %v1710 = vsel %vm1706, %v1701, %v1534
      %v1711 = vsel %vm1706, %v1702, %v1536
      %v1712 = vsel %vm1706, %v1703, %v1538
      %v1713 = vsel %vm1706, %v1704, %v1540
      %v1714 = vsel %vm1706, %v1705, %v1542
      %vm1715 = vcmask 326656
      %v1716 = vsel %vm1715, %v1707, %v1560
      %v1717 = vsel %vm1715, %v1708, %v1562
      %v1718 = vsel %vm1715, %v1709, %v1564
      %v1719 = vsel %vm1715, %v1710, %v1566
      %v1720 = vsel %vm1715, %v1711, %v1568
      %v1721 = vsel %vm1715, %v1712, %v1570
      %v1722 = vsel %vm1715, %v1713, %v1572
      %v1723 = vsel %vm1715, %v1714, %v1574
      %vm1724 = vcmask 392192
      %v1725 = vsel %vm1724, %v1716, %v1592
      %v1726 = vsel %vm1724, %v1717, %v1594
      %v1727 = vsel %vm1724, %v1718, %v1596
      %v1728 = vsel %vm1724, %v1719, %v1598
      %v1729 = vsel %vm1724, %v1720, %v1600
      %v1730 = vsel %vm1724, %v1721, %v1602
      %v1731 = vsel %vm1724, %v1722, %v1604
      %v1732 = vsel %vm1724, %v1723, %v1606
      %vm1733 = vcmask 457728
      %v1734 = vsel %vm1733, %v1725, %v1624
      %v1735 = vsel %vm1733, %v1726, %v1626
      %v1736 = vsel %vm1733, %v1727, %v1628
      %v1737 = vsel %vm1733, %v1728, %v1630
      %v1738 = vsel %vm1733, %v1729, %v1632
      %v1739 = vsel %vm1733, %v1730, %v1634
      %v1740 = vsel %vm1733, %v1731, %v1636
      %v1741 = vsel %vm1733, %v1732, %v1638
      %vm1742 = vcmask 523264
      %v1743 = vsel %vm1742, %v1734, %v1656
      %v1744 = vsel %vm1742, %v1735, %v1658
      %v1745 = vsel %vm1742, %v1736, %v1660
      %v1746 = vsel %vm1742, %v1737, %v1662
      %v1747 = vsel %vm1742, %v1738, %v1664
      %v1748 = vsel %vm1742, %v1739, %v1666
      %v1749 = vsel %vm1742, %v1740, %v1668
      %v1750 = vsel %vm1742, %v1741, %v1670
      %v1751 = vld [vmem:[%s4] sm:$0xff]
      %v1752 = vld [vmem:[%s4 + $0x8] sm:$0xff]
      %v1753 = vld [vmem:[%s4 + $0x10] sm:$0xff]
      %v1754 = vld [vmem:[%s4 + $0x18] sm:$0xff]
      %v1755 = vld [vmem:[%s4 + $0x20] sm:$0xff]
      %v1756 = vld [vmem:[%s4 + $0x28] sm:$0xff]
      %v1757 = vld [vmem:[%s4 + $0x30] sm:$0xff]
      %v1758 = vld [vmem:[%s4 + $0x38] sm:$0xff]
      %v1759 = vld [vmem:[%s4 + $0x40] sm:$0xff]
      %v1760 = vld [vmem:[%s5] sm:$0x1]
      %v1762 = vlaneseq
      %v1763 = vshrl.u32 %v1762, 7
      %v1764 = vsub.s32 0, %v1763
      %v1765 = vrot.slane %v1760, %v1764
      %vm1767 = vcmask 588800
      %v1769 = vsel %vm1767, %v1743, 0
      %v1772 = vsel %vm1767, %v1744, 0
      %v1775 = vsel %vm1767, %v1745, 0
      %v1778 = vsel %vm1767, %v1746, 0
      %v1781 = vsel %vm1767, %v1747, 0
      %v1784 = vsel %vm1767, %v1748, 0
      %v1787 = vsel %vm1767, %v1749, 0
      %v1790 = vsel %vm1767, %v1750, 0
      %1792 = vmatprep.subr.mxu0 0.0
      %1793 = vmatpush1.msra.mxu0 %v1751
      %1794 = vmatprep.subr.mxu0 0.0
      %1795 = vmatpush1.msra.mxu0 %v1752
      %1796 = vmatprep.subr.mxu0 0.0
      %1797 = vmatpush1.msra.mxu0 %v1753
      %1798 = vmatprep.subr.mxu0 0.0
      %1799 = vmatpush1.msra.mxu0 %v1754
      %1800 = vmatprep.subr.mxu0 0.0
      %1801 = vmatpush1.msra.mxu0 %v1755
      %1802 = vmatprep.subr.mxu0 0.0
      %1803 = vmatpush1.msra.mxu0 %v1756
      %1804 = vmatprep.subr.mxu0 0.0
      %1805 = vmatpush1.msra.mxu0 %v1757
      %1806 = vmatprep.subr.mxu0 0.0
      %1807 = vmatpush1.msra.mxu0 %v1758
      %1808 = vmatprep.subr.mxu0 0.0
      %1809 = vmatpush1.msra.mxu0 %v1759
      %1810 = vmatprep.subr.mxu0 0.0
      %1811 = vmatpush1.msra.mxu0 0.0
      %1812 = vmatprep.subr.mxu0 0.0
      %1813 = vmatpush1.msra.mxu0 0.0
      %1814 = vmatprep.subr.mxu0 0.0
      %1815 = vmatpush1.msra.mxu0 0.0
      %1816 = vmatprep.subr.mxu0 0.0
      %1817 = vmatpush1.msra.mxu0 0.0
      %1818 = vmatprep.subr.mxu0 0.0
      %1819 = vmatpush1.msra.mxu0 0.0
      %1820 = vmatprep.subr.mxu0 0.0
      %1821 = vmatpush1.msra.mxu0 0.0
      %1822 = vmatprep.subr.mxu0 0.0
      %1823 = vmatpush1.msra.mxu0 0.0
      %1824 = vmatprep.subr.mxu0 0.0
      %1825 = vmatpush1.msra.mxu0 0.0
      %1826 = vmatprep.subr.mxu0 0.0
      %1827 = vmatpush1.msra.mxu0 0.0
      %1828 = vmatprep.subr.mxu0 0.0
      %1829 = vmatpush1.msra.mxu0 0.0
      %1830 = vmatprep.subr.mxu0 0.0
      %1831 = vmatpush1.msra.mxu0 0.0
      %1832 = vmatprep.subr.mxu0 0.0
      %1833 = vmatpush1.msra.mxu0 0.0
      %1834 = vmatprep.subr.mxu0 0.0
      %1835 = vmatpush1.msra.mxu0 0.0
      %1836 = vmatprep.subr.mxu0 0.0
      %1837 = vmatpush1.msra.mxu0 0.0
      %1838 = vmatprep.subr.mxu0 0.0
      %1839 = vmatpush1.msra.mxu0 0.0
      %1840 = vmatprep.subr.mxu0 0.0
      %1841 = vmatpush1.msra.mxu0 0.0
      %1842 = vmatprep.subr.mxu0 0.0
      %1843 = vmatpush1.msra.mxu0 0.0
      %1844 = vmatprep.subr.mxu0 0.0
      %1845 = vmatpush1.msra.mxu0 0.0
      %1846 = vmatprep.subr.mxu0 0.0
      %1847 = vmatpush1.msra.mxu0 0.0
      %1848 = vmatprep.subr.mxu0 0.0
      %1849 = vmatpush1.msra.mxu0 0.0
      %1850 = vmatprep.subr.mxu0 0.0
      %1851 = vmatpush1.msra.mxu0 0.0
      %1852 = vmatprep.subr.mxu0 0.0
      %1853 = vmatpush1.msra.mxu0 0.0
      %1854 = vmatprep.subr.mxu0 0.0
      %1855 = vmatpush1.msra.mxu0 0.0
      %1856 = vmatprep.mubr.f32.mxu0 0.0
      %1857 = vmatmul.mubr.f32.gmra.mrb[0].mxu0 %v1769
      %v1858 = vpop.f32.mrb[0].mxu0
      %v1859 = vadd.f32 %v1765, %v1858
      %v1860 = vpop.f32.mrb[0].mxu0
      %1861 = vmatprep.mubr.f32.mxu0 0.0
      %1862 = vmatmul.mubr.f32.gmra.mrb[0].mxu0 %v1772
      %v1863 = vpop.f32.mrb[0].mxu0
      %v1864 = vadd.f32 %v1765, %v1863
      %v1865 = vpop.f32.mrb[0].mxu0
      %1866 = vmatprep.mubr.f32.mxu0 0.0
      %1867 = vmatmul.mubr.f32.gmra.mrb[0].mxu0 %v1775
      %v1868 = vpop.f32.mrb[0].mxu0
      %v1869 = vadd.f32 %v1765, %v1868
      %v1870 = vpop.f32.mrb[0].mxu0
      %1871 = vmatprep.mubr.f32.mxu0 0.0
      %1872 = vmatmul.mubr.f32.gmra.mrb[0].mxu0 %v1778
      %v1873 = vpop.f32.mrb[0].mxu0
      %v1874 = vadd.f32 %v1765, %v1873
      %v1875 = vpop.f32.mrb[0].mxu0
      %1876 = vmatprep.mubr.f32.mxu0 0.0
      %1877 = vmatmul.mubr.f32.gmra.mrb[0].mxu0 %v1781
      %v1878 = vpop.f32.mrb[0].mxu0
      %v1879 = vadd.f32 %v1765, %v1878
      %v1880 = vpop.f32.mrb[0].mxu0
      %1881 = vmatprep.mubr.f32.mxu0 0.0
      %1882 = vmatmul.mubr.f32.gmra.mrb[0].mxu0 %v1784
      %v1883 = vpop.f32.mrb[0].mxu0
      %v1884 = vadd.f32 %v1765, %v1883
      %v1885 = vpop.f32.mrb[0].mxu0
      %1886 = vmatprep.mubr.f32.mxu0 0.0
      %1887 = vmatmul.mubr.f32.gmra.mrb[0].mxu0 %v1787
      %v1888 = vpop.f32.mrb[0].mxu0
      %v1889 = vadd.f32 %v1765, %v1888
      %v1890 = vpop.f32.mrb[0].mxu0
      %1891 = vmatprep.mubr.f32.mxu0 0.0
      %1892 = vmatmul.mubr.f32.gmra.mrb[0].mxu0 %v1790
      %v1893 = vpop.f32.mrb[0].mxu0
      %v1894 = vadd.f32 %v1765, %v1893
      %v1895 = vpop.f32.mrb[0].mxu0
      %1896 = vdwg.mxu0
      %vm1897 = vcmp.ge.f32.partialorder %v1859, 0.0
      %vm1898 = vcmp.ge.f32.partialorder %v1864, 0.0
      %vm1899 = vcmp.ge.f32.partialorder %v1869, 0.0
      %vm1900 = vcmp.ge.f32.partialorder %v1874, 0.0
      %vm1901 = vcmp.ge.f32.partialorder %v1879, 0.0
      %vm1902 = vcmp.ge.f32.partialorder %v1884, 0.0
      %vm1903 = vcmp.ge.f32.partialorder %v1889, 0.0
      %vm1904 = vcmp.ge.f32.partialorder %v1894, 0.0
      %v1905 = vmul.f32 %v1859, 0.2
      %v1906 = vmul.f32 %v1864, 0.2
      %v1907 = vmul.f32 %v1869, 0.2
      %v1908 = vmul.f32 %v1874, 0.2
      %v1909 = vmul.f32 %v1879, 0.2
      %v1910 = vmul.f32 %v1884, 0.2
      %v1911 = vmul.f32 %v1889, 0.2
      %v1912 = vmul.f32 %v1894, 0.2
      %v1913 = vsel %vm1897, %v1859, %v1905
      %v1914 = vsel %vm1898, %v1864, %v1906
      %v1915 = vsel %vm1899, %v1869, %v1907
      %v1916 = vsel %vm1900, %v1874, %v1908
      %v1917 = vsel %vm1901, %v1879, %v1909
      %v1918 = vsel %vm1902, %v1884, %v1910
      %v1919 = vsel %vm1903, %v1889, %v1911
      %v1920 = vsel %vm1904, %v1894, %v1912
      %v1921 = vld [vmem:[%s6] sm:$0xff]
      %v1922 = vld [vmem:[%s6 + $0x8] sm:$0xff]
      %v1923 = vld [vmem:[%s6 + $0x10] sm:$0xff]
      %v1924 = vld [vmem:[%s6 + $0x18] sm:$0xff]
      %v1925 = vld [vmem:[%s6 + $0x20] sm:$0xff]
      %v1926 = vld [vmem:[%s6 + $0x28] sm:$0xff]
      %v1927 = vld [vmem:[%s6 + $0x30] sm:$0xff]
      %v1928 = vld [vmem:[%s6 + $0x38] sm:$0xff]
      %v1929 = vld [vmem:[%s6 + $0x40] sm:$0xff]
      %v1930 = vld [vmem:[%s6 + $0x48] sm:$0xff]
      %v1931 = vld [vmem:[%s6 + $0x50] sm:$0xff]
      %v1932 = vld [vmem:[%s6 + $0x58] sm:$0xff]
      %v1933 = vld [vmem:[%s6 + $0x60] sm:$0xff]
      %v1934 = vld [vmem:[%s6 + $0x68] sm:$0xff]
      %v1935 = vld [vmem:[%s6 + $0x70] sm:$0xff]
      %v1936 = vld [vmem:[%s6 + $0x78] sm:$0xff]
      %v1937 = vld [vmem:[%s6 + $0x80] sm:$0xff]
      %v1938 = vld [vmem:[%s6 + $0x88] sm:$0xff]
      %v1940 = vsel %vm1742, %v1921, 0
      %v1943 = vsel %vm1742, %v1922, 0
      %v1946 = vsel %vm1742, %v1923, 0
      %v1949 = vsel %vm1742, %v1924, 0
      %v1952 = vsel %vm1742, %v1925, 0
      %v1955 = vsel %vm1742, %v1926, 0
      %v1958 = vsel %vm1742, %v1927, 0
      %v1961 = vsel %vm1742, %v1928, 0
      %v1964 = vsel %vm1742, %v1929, 0
      %v1967 = vsel %vm1742, %v1930, 0
      %v1970 = vsel %vm1742, %v1931, 0
      %v1973 = vsel %vm1742, %v1932, 0
      %v1976 = vsel %vm1742, %v1933, 0
      %v1979 = vsel %vm1742, %v1934, 0
      %v1982 = vsel %vm1742, %v1935, 0
      %v1985 = vsel %vm1742, %v1936, 0
      %v1988 = vsel %vm1742, %v1937, 0
      %v1991 = vsel %vm1742, %v1938, 0
      %1993 = vmatprep.subr.mxu0 0.0
      %1994 = vmatpush1.msra.mxu0 %v1913
      %1995 = vmatprep.subr.mxu0 0.0
      %1996 = vmatpush1.msra.mxu0 %v1914
      %1997 = vmatprep.subr.mxu0 0.0
      %1998 = vmatpush1.msra.mxu0 %v1915
      %1999 = vmatprep.subr.mxu0 0.0
      %2000 = vmatpush1.msra.mxu0 %v1916
      %2001 = vmatprep.subr.mxu0 0.0
      %2002 = vmatpush1.msra.mxu0 %v1917
      %2003 = vmatprep.subr.mxu0 0.0
      %2004 = vmatpush1.msra.mxu0 %v1918
      %2005 = vmatprep.subr.mxu0 0.0
      %2006 = vmatpush1.msra.mxu0 %v1919
      %2007 = vmatprep.subr.mxu0 0.0
      %2008 = vmatpush1.msra.mxu0 %v1920
      %2009 = vmatprep.subr.mxu0 0.0
      %2010 = vmatpush1.msra.mxu0 0.0
      %2011 = vmatprep.subr.mxu0 0.0
      %2012 = vmatpush1.msra.mxu0 0.0
      %2013 = vmatprep.subr.mxu0 0.0
      %2014 = vmatpush1.msra.mxu0 0.0
      %2015 = vmatprep.subr.mxu0 0.0
      %2016 = vmatpush1.msra.mxu0 0.0
      %2017 = vmatprep.subr.mxu0 0.0
      %2018 = vmatpush1.msra.mxu0 0.0
      %2019 = vmatprep.subr.mxu0 0.0
      %2020 = vmatpush1.msra.mxu0 0.0
      %2021 = vmatprep.subr.mxu0 0.0
      %2022 = vmatpush1.msra.mxu0 0.0
      %2023 = vmatprep.subr.mxu0 0.0
      %2024 = vmatpush1.msra.mxu0 0.0
      %2025 = vmatprep.subr.mxu0 0.0
      %2026 = vmatpush1.msra.mxu0 0.0
      %2027 = vmatprep.subr.mxu0 0.0
      %2028 = vmatpush1.msra.mxu0 0.0
      %2029 = vmatprep.subr.mxu0 0.0
      %2030 = vmatpush1.msra.mxu0 0.0
      %2031 = vmatprep.subr.mxu0 0.0
      %2032 = vmatpush1.msra.mxu0 0.0
      %2033 = vmatprep.subr.mxu0 0.0
      %2034 = vmatpush1.msra.mxu0 0.0
      %2035 = vmatprep.subr.mxu0 0.0
      %2036 = vmatpush1.msra.mxu0 0.0
      %2037 = vmatprep.subr.mxu0 0.0
      %2038 = vmatpush1.msra.mxu0 0.0
      %2039 = vmatprep.subr.mxu0 0.0
      %2040 = vmatpush1.msra.mxu0 0.0
      %2041 = vmatprep.subr.mxu0 0.0
      %2042 = vmatpush1.msra.mxu0 0.0
      %2043 = vmatprep.subr.mxu0 0.0
      %2044 = vmatpush1.msra.mxu0 0.0
      %2045 = vmatprep.subr.mxu0 0.0
      %2046 = vmatpush1.msra.mxu0 0.0
      %2047 = vmatprep.subr.mxu0 0.0
      %2048 = vmatpush1.msra.mxu0 0.0
      %2049 = vmatprep.subr.mxu0 0.0
      %2050 = vmatpush1.msra.mxu0 0.0
      %2051 = vmatprep.subr.mxu0 0.0
      %2052 = vmatpush1.msra.mxu0 0.0
      %2053 = vmatprep.subr.mxu0 0.0
      %2054 = vmatpush1.msra.mxu0 0.0
      %2055 = vmatprep.subr.mxu0 0.0
      %2056 = vmatpush1.msra.mxu0 0.0
      %2057 = vmatprep.mubr.f32.mxu0 0.0
      %2058 = vmatmul.mubr.f32.gmra.mrb[0].mxu0 %v1940
      %v2059 = vpop.f32.mrb[0].mxu0
      %v2060 = vadd.f32 0.0, %v2059
      %v2061 = vpop.f32.mrb[0].mxu0
      %2062 = vmatprep.mubr.f32.mxu0 0.0
      %2063 = vmatmul.mubr.f32.gmra.mrb[0].mxu0 %v1943
      %v2064 = vpop.f32.mrb[0].mxu0
      %v2065 = vadd.f32 0.0, %v2064
      %v2066 = vpop.f32.mrb[0].mxu0
      %2067 = vmatprep.mubr.f32.mxu0 0.0
      %2068 = vmatmul.mubr.f32.gmra.mrb[0].mxu0 %v1946
      %v2069 = vpop.f32.mrb[0].mxu0
      %v2070 = vadd.f32 0.0, %v2069
      %v2071 = vpop.f32.mrb[0].mxu0
      %2072 = vmatprep.mubr.f32.mxu0 0.0
      %2073 = vmatmul.mubr.f32.gmra.mrb[0].mxu0 %v1949
      %v2074 = vpop.f32.mrb[0].mxu0
      %v2075 = vadd.f32 0.0, %v2074
      %v2076 = vpop.f32.mrb[0].mxu0
      %2077 = vmatprep.mubr.f32.mxu0 0.0
      %2078 = vmatmul.mubr.f32.gmra.mrb[0].mxu0 %v1952
      %v2079 = vpop.f32.mrb[0].mxu0
      %v2080 = vadd.f32 0.0, %v2079
      %v2081 = vpop.f32.mrb[0].mxu0
      %2082 = vmatprep.mubr.f32.mxu0 0.0
      %2083 = vmatmul.mubr.f32.gmra.mrb[0].mxu0 %v1955
      %v2084 = vpop.f32.mrb[0].mxu0
      %v2085 = vadd.f32 0.0, %v2084
      %v2086 = vpop.f32.mrb[0].mxu0
      %2087 = vmatprep.mubr.f32.mxu0 0.0
      %2088 = vmatmul.mubr.f32.gmra.mrb[0].mxu0 %v1958
      %v2089 = vpop.f32.mrb[0].mxu0
      %v2090 = vadd.f32 0.0, %v2089
      %v2091 = vpop.f32.mrb[0].mxu0
      %2092 = vmatprep.mubr.f32.mxu0 0.0
      %2093 = vmatmul.mubr.f32.gmra.mrb[0].mxu0 %v1961
      %v2094 = vpop.f32.mrb[0].mxu0
      %v2095 = vadd.f32 0.0, %v2094
      %v2096 = vpop.f32.mrb[0].mxu0
      %2097 = vmatprep.mubr.f32.mxu0 0.0
      %2098 = vmatmul.mubr.f32.gmra.mrb[0].mxu0 %v1964
      %v2099 = vpop.f32.mrb[0].mxu0
      %v2100 = vadd.f32 0.0, %v2099
      %v2101 = vpop.f32.mrb[0].mxu0
      %2102 = vmatprep.mubr.f32.mxu0 0.0
      %2103 = vmatmul.mubr.f32.gmra.mrb[0].mxu0 %v1967
      %v2104 = vpop.f32.mrb[0].mxu0
      %v2105 = vadd.f32 0.0, %v2104
      %v2106 = vpop.f32.mrb[0].mxu0
      %2107 = vmatprep.mubr.f32.mxu0 0.0
      %2108 = vmatmul.mubr.f32.gmra.mrb[0].mxu0 %v1970
      %v2109 = vpop.f32.mrb[0].mxu0
      %v2110 = vadd.f32 0.0, %v2109
      %v2111 = vpop.f32.mrb[0].mxu0
      %2112 = vmatprep.mubr.f32.mxu0 0.0
      %2113 = vmatmul.mubr.f32.gmra.mrb[0].mxu0 %v1973
      %v2114 = vpop.f32.mrb[0].mxu0
      %v2115 = vadd.f32 0.0, %v2114
      %v2116 = vpop.f32.mrb[0].mxu0
      %2117 = vmatprep.mubr.f32.mxu0 0.0
      %2118 = vmatmul.mubr.f32.gmra.mrb[0].mxu0 %v1976
      %v2119 = vpop.f32.mrb[0].mxu0
      %v2120 = vadd.f32 0.0, %v2119
      %v2121 = vpop.f32.mrb[0].mxu0
      %2122 = vmatprep.mubr.f32.mxu0 0.0
      %2123 = vmatmul.mubr.f32.gmra.mrb[0].mxu0 %v1979
      %v2124 = vpop.f32.mrb[0].mxu0
      %v2125 = vadd.f32 0.0, %v2124
      %v2126 = vpop.f32.mrb[0].mxu0
      %2127 = vmatprep.mubr.f32.mxu0 0.0
      %2128 = vmatmul.mubr.f32.gmra.mrb[0].mxu0 %v1982
      %v2129 = vpop.f32.mrb[0].mxu0
      %v2130 = vadd.f32 0.0, %v2129
      %v2131 = vpop.f32.mrb[0].mxu0
      %2132 = vmatprep.mubr.f32.mxu0 0.0
      %2133 = vmatmul.mubr.f32.gmra.mrb[0].mxu0 %v1985
      %v2134 = vpop.f32.mrb[0].mxu0
      %v2135 = vadd.f32 0.0, %v2134
      %v2136 = vpop.f32.mrb[0].mxu0
      %2137 = vmatprep.mubr.f32.mxu0 0.0
      %2138 = vmatmul.mubr.f32.gmra.mrb[0].mxu0 %v1988
      %v2139 = vpop.f32.mrb[0].mxu0
      %v2140 = vadd.f32 0.0, %v2139
      %v2141 = vpop.f32.mrb[0].mxu0
      %2142 = vmatprep.mubr.f32.mxu0 0.0
      %2143 = vmatmul.mubr.f32.gmra.mrb[0].mxu0 %v1991
      %v2144 = vpop.f32.mrb[0].mxu0
      %v2145 = vadd.f32 0.0, %v2144
      %v2146 = vpop.f32.mrb[0].mxu0
      %2147 = vdwg.mxu0
      %2150 = vrot.lane.b32.xlu0 %v2070, 16
      %v2151 = vpop.permute.xlu0 %2150
      %2152 = vrot.lane.b32.xlu0 %v2075, 16
      %v2153 = vpop.permute.xlu0 %2152
      %2158 = vrot.lane.b32.xlu0 %v2080, 32
      %v2159 = vpop.permute.xlu0 %2158
      %2160 = vrot.lane.b32.xlu0 %v2085, 32
      %v2161 = vpop.permute.xlu0 %2160
      %2166 = vrot.lane.b32.xlu0 %v2090, 48
      %v2167 = vpop.permute.xlu0 %2166
      %2168 = vrot.lane.b32.xlu0 %v2095, 48
      %v2169 = vpop.permute.xlu0 %2168
      %2174 = vrot.lane.b32.xlu0 %v2100, 64
      %v2175 = vpop.permute.xlu0 %2174
      %2176 = vrot.lane.b32.xlu0 %v2105, 64
      %v2177 = vpop.permute.xlu0 %2176
      %2182 = vrot.lane.b32.xlu0 %v2110, 80
      %v2183 = vpop.permute.xlu0 %2182
      %2184 = vrot.lane.b32.xlu0 %v2115, 80
      %v2185 = vpop.permute.xlu0 %2184
      %2190 = vrot.lane.b32.xlu0 %v2120, 96
      %v2191 = vpop.permute.xlu0 %2190
      %2192 = vrot.lane.b32.xlu0 %v2125, 96
      %v2193 = vpop.permute.xlu0 %2192
      %2198 = vrot.lane.b32.xlu0 %v2130, 112
      %v2199 = vpop.permute.xlu0 %2198
      %2200 = vrot.lane.b32.xlu0 %v2135, 112
      %v2201 = vpop.permute.xlu0 %2200
      %v2204 = vsel %vm1688, %v2060, %v2151
      %v2205 = vsel %vm1688, %v2065, %v2153
      %v2206 = vsel %vm1706, %v2204, %v2159
      %v2207 = vsel %vm1706, %v2205, %v2161
      %v2208 = vsel %vm1724, %v2206, %v2167
      %v2209 = vsel %vm1724, %v2207, %v2169
      %v2210 = vsel %vm1742, %v2208, %v2175
      %v2211 = vsel %vm1742, %v2209, %v2177
      %vm2212 = vcmask 654336
      %v2213 = vsel %vm2212, %v2210, %v2183
      %v2214 = vsel %vm2212, %v2211, %v2185
      %vm2215 = vcmask 785408
      %v2216 = vsel %vm2215, %v2213, %v2191
      %v2217 = vsel %vm2215, %v2214, %v2193
      %vm2218 = vcmask 916480
      %v2219 = vsel %vm2218, %v2216, %v2199
      %v2220 = vsel %vm2218, %v2217, %v2201
      %v2221 = vld [vmem:[%s7] sm:$0xff]
      %v2222 = vld [vmem:[%s7 + $0x8] sm:$0xff]
      %v2223 = vld [vmem:[%s7 + $0x10] sm:$0xff]
      %v2224 = vld [vmem:[%s7 + $0x18] sm:$0xff]
      %v2225 = vld [vmem:[%s7 + $0x20] sm:$0xff]
      %v2226 = vld [vmem:[%s7 + $0x28] sm:$0xff]
      %v2227 = vld [vmem:[%s7 + $0x30] sm:$0xff]
      %v2228 = vld [vmem:[%s7 + $0x38] sm:$0xff]
      %v2229 = vld [vmem:[%s7 + $0x40] sm:$0xff]
      %v2230 = vld [vmem:[%s7 + $0x48] sm:$0xff]
      %v2231 = vld [vmem:[%s7 + $0x50] sm:$0xff]
      %v2232 = vld [vmem:[%s7 + $0x58] sm:$0xff]
      %v2233 = vld [vmem:[%s7 + $0x60] sm:$0xff]
      %v2234 = vld [vmem:[%s7 + $0x68] sm:$0xff]
      %v2235 = vld [vmem:[%s7 + $0x70] sm:$0xff]
      %v2236 = vld [vmem:[%s7 + $0x78] sm:$0xff]
      %v2237 = vld [vmem:[%s7 + $0x80] sm:$0xff]
      %v2238 = vld [vmem:[%s7 + $0x88] sm:$0xff]
      %v2239 = vld [vmem:[%s8] sm:$0x1]
      %v2241 = vlaneseq
      %v2242 = vshrl.u32 %v2241, 7
      %v2243 = vsub.s32 0, %v2242
      %v2244 = vrot.slane %v2239, %v2243
      %v2247 = vsel %vm1688, %v2140, 0
      %v2250 = vsel %vm1688, %v2145, 0
      %2252 = vmatprep.subr.mxu0 0.0
      %2253 = vmatpush1.msra.mxu0 %v2221
      %2254 = vmatprep.subr.mxu0 0.0
      %2255 = vmatpush1.msra.mxu0 %v2222
      %2256 = vmatprep.subr.mxu0 0.0
      %2257 = vmatpush1.msra.mxu0 %v2223
      %2258 = vmatprep.subr.mxu0 0.0
      %2259 = vmatpush1.msra.mxu0 %v2224
      %2260 = vmatprep.subr.mxu0 0.0
      %2261 = vmatpush1.msra.mxu0 %v2225
      %2262 = vmatprep.subr.mxu0 0.0
      %2263 = vmatpush1.msra.mxu0 %v2226
      %2264 = vmatprep.subr.mxu0 0.0
      %2265 = vmatpush1.msra.mxu0 %v2227
      %2266 = vmatprep.subr.mxu0 0.0
      %2267 = vmatpush1.msra.mxu0 %v2228
      %2268 = vmatprep.subr.mxu0 0.0
      %2269 = vmatpush1.msra.mxu0 %v2229
      %2270 = vmatprep.subr.mxu0 0.0
      %2271 = vmatpush1.msra.mxu0 %v2230
      %2272 = vmatprep.subr.mxu0 0.0
      %2273 = vmatpush1.msra.mxu0 %v2231
      %2274 = vmatprep.subr.mxu0 0.0
      %2275 = vmatpush1.msra.mxu0 %v2232
      %2276 = vmatprep.subr.mxu0 0.0
      %2277 = vmatpush1.msra.mxu0 %v2233
      %2278 = vmatprep.subr.mxu0 0.0
      %2279 = vmatpush1.msra.mxu0 %v2234
      %2280 = vmatprep.subr.mxu0 0.0
      %2281 = vmatpush1.msra.mxu0 %v2235
      %2282 = vmatprep.subr.mxu0 0.0
      %2283 = vmatpush1.msra.mxu0 %v2236
      %2284 = vmatprep.subr.mxu0 0.0
      %2285 = vmatpush1.msra.mxu0 %v2237
      %2286 = vmatprep.subr.mxu0 0.0
      %2287 = vmatpush1.msra.mxu0 %v2238
      %2288 = vmatprep.subr.mxu0 0.0
      %2289 = vmatpush1.msra.mxu0 0.0
      %2290 = vmatprep.subr.mxu0 0.0
      %2291 = vmatpush1.msra.mxu0 0.0
      %2292 = vmatprep.subr.mxu0 0.0
      %2293 = vmatpush1.msra.mxu0 0.0
      %2294 = vmatprep.subr.mxu0 0.0
      %2295 = vmatpush1.msra.mxu0 0.0
      %2296 = vmatprep.subr.mxu0 0.0
      %2297 = vmatpush1.msra.mxu0 0.0
      %2298 = vmatprep.subr.mxu0 0.0
      %2299 = vmatpush1.msra.mxu0 0.0
      %2300 = vmatprep.subr.mxu0 0.0
      %2301 = vmatpush1.msra.mxu0 0.0
      %2302 = vmatprep.subr.mxu0 0.0
      %2303 = vmatpush1.msra.mxu0 0.0
      %2304 = vmatprep.subr.mxu0 0.0
      %2305 = vmatpush1.msra.mxu0 0.0
      %2306 = vmatprep.subr.mxu0 0.0
      %2307 = vmatpush1.msra.mxu0 0.0
      %2308 = vmatprep.subr.mxu0 0.0
      %2309 = vmatpush1.msra.mxu0 0.0
      %2310 = vmatprep.subr.mxu0 0.0
      %2311 = vmatpush1.msra.mxu0 0.0
      %2312 = vmatprep.subr.mxu0 0.0
      %2313 = vmatpush1.msra.mxu0 0.0
      %2314 = vmatprep.subr.mxu0 0.0
      %2315 = vmatpush1.msra.mxu0 0.0
      %2316 = vmatprep.mubr.f32.mxu0 %v2247
      %2317 = vmatmul.mubr.f32.gmra.mrb[0].mxu0 %v2219
      %v2318 = vpop.f32.mrb[0].mxu0
      %v2319 = vadd.f32 %v2244, %v2318
      %v2320 = vpop.f32.mrb[0].mxu0
      %2321 = vmatprep.mubr.f32.mxu0 %v2250
      %2322 = vmatmul.mubr.f32.gmra.mrb[0].mxu0 %v2220
      %v2323 = vpop.f32.mrb[0].mxu0
      %v2324 = vadd.f32 %v2244, %v2323
      %v2325 = vpop.f32.mrb[0].mxu0
      %2326 = vdwg.mxu0
      %vm2327 = vcmp.ge.f32.partialorder %v2319, 0.0
      %vm2328 = vcmp.ge.f32.partialorder %v2324, 0.0
      %v2329 = vmul.f32 %v2319, 0.2
      %v2330 = vmul.f32 %v2324, 0.2
      %v2331 = vsel %vm2327, %v2319, %v2329
      %v2332 = vsel %vm2328, %v2324, %v2330
      %v2333 = vld [vmem:[%s9] sm:$0xff]
      %v2334 = vld [vmem:[%s9 + $0x8] sm:$0xff]
      %v2335 = vmul.f32 %v2331, %v2333
      %v2336 = vmul.f32 %v2332, %v2334
      %v2338 = vsel %vm1706, %v2335, 0
      %v2341 = vsel %vm1706, %v2336, 0
      %2343 = vmatprep.subr.mxu0 0.0
      %2344 = vmatpush1.msra.mxu0 1.0
      %2345 = vmatprep.subr.mxu0 0.0
      %2346 = vmatpush1.msra.mxu0 1.0
      %2347 = vmatprep.subr.mxu0 0.0
      %2348 = vmatpush1.msra.mxu0 1.0
      %2349 = vmatprep.subr.mxu0 0.0
      %2350 = vmatpush1.msra.mxu0 1.0
      %2351 = vmatprep.subr.mxu0 0.0
      %2352 = vmatpush1.msra.mxu0 0.0
      %2353 = vmatprep.subr.mxu0 0.0
      %2354 = vmatpush1.msra.mxu0 0.0
      %2355 = vmatprep.subr.mxu0 0.0
      %2356 = vmatpush1.msra.mxu0 0.0
      %2357 = vmatprep.subr.mxu0 0.0
      %2358 = vmatpush1.msra.mxu0 0.0
      %2359 = vmatprep.subr.mxu0 0.0
      %2360 = vmatpush1.msra.mxu0 0.0
      %2361 = vmatprep.subr.mxu0 0.0
      %2362 = vmatpush1.msra.mxu0 0.0
      %2363 = vmatprep.subr.mxu0 0.0
      %2364 = vmatpush1.msra.mxu0 0.0
      %2365 = vmatprep.subr.mxu0 0.0
      %2366 = vmatpush1.msra.mxu0 0.0
      %2367 = vmatprep.subr.mxu0 0.0
      %2368 = vmatpush1.msra.mxu0 0.0
      %2369 = vmatprep.subr.mxu0 0.0
      %2370 = vmatpush1.msra.mxu0 0.0
      %2371 = vmatprep.subr.mxu0 0.0
      %2372 = vmatpush1.msra.mxu0 0.0
      %2373 = vmatprep.subr.mxu0 0.0
      %2374 = vmatpush1.msra.mxu0 0.0
      %2375 = vmatprep.subr.mxu0 0.0
      %2376 = vmatpush1.msra.mxu0 0.0
      %2377 = vmatprep.subr.mxu0 0.0
      %2378 = vmatpush1.msra.mxu0 0.0
      %2379 = vmatprep.subr.mxu0 0.0
      %2380 = vmatpush1.msra.mxu0 0.0
      %2381 = vmatprep.subr.mxu0 0.0
      %2382 = vmatpush1.msra.mxu0 0.0
      %2383 = vmatprep.subr.mxu0 0.0
      %2384 = vmatpush1.msra.mxu0 0.0
      %2385 = vmatprep.subr.mxu0 0.0
      %2386 = vmatpush1.msra.mxu0 0.0
      %2387 = vmatprep.subr.mxu0 0.0
      %2388 = vmatpush1.msra.mxu0 0.0
      %2389 = vmatprep.subr.mxu0 0.0
      %2390 = vmatpush1.msra.mxu0 0.0
      %2391 = vmatprep.subr.mxu0 0.0
      %2392 = vmatpush1.msra.mxu0 0.0
      %2393 = vmatprep.subr.mxu0 0.0
      %2394 = vmatpush1.msra.mxu0 0.0
      %2395 = vmatprep.subr.mxu0 0.0
      %2396 = vmatpush1.msra.mxu0 0.0
      %2397 = vmatprep.subr.mxu0 0.0
      %2398 = vmatpush1.msra.mxu0 0.0
      %2399 = vmatprep.subr.mxu0 0.0
      %2400 = vmatpush1.msra.mxu0 0.0
      %2401 = vmatprep.subr.mxu0 0.0
      %2402 = vmatpush1.msra.mxu0 0.0
      %2403 = vmatprep.subr.mxu0 0.0
      %2404 = vmatpush1.msra.mxu0 0.0
      %2405 = vmatprep.subr.mxu0 0.0
      %2406 = vmatpush1.msra.mxu0 0.0
      %2407 = vmatprep.mubr.f32.mxu0 0.0
      %2408 = vmatmul.mubr.f32.gmra.mrb[0].mxu0 %v2338
      %v2409 = vpop.f32.mrb[0].mxu0
      %v2410 = vadd.f32 0.0, %v2409
      %v2411 = vpop.f32.mrb[0].mxu0
      %2412 = vmatprep.mubr.f32.mxu0 0.0
      %2413 = vmatmul.mubr.f32.gmra.mrb[0].mxu0 %v2341
      %v2414 = vpop.f32.mrb[0].mxu0
      %v2415 = vadd.f32 0.0, %v2414
      %v2416 = vpop.f32.mrb[0].mxu0
      %2417 = vdwg.mxu0
      %vm2418 = vcmask 7168
      %v2419 = vsel %vm2418, %v2410, 0.0
      %v2420 = vsel %vm2418, %v2415, 0.0
      %v2421 = vadd.f32 %v2419, %v2420
      %2422 = vadd.xlane.f32.xlu0 %v2421
      %v2423 = vpop.xlane.xlu0 %2422
      %v2424 = vrot.slane %v2423, 4
      %v2425 = vadd.f32 %v2423, %v2424
      %v2426 = vrot.slane %v2425, 2
      %v2427 = vadd.f32 %v2425, %v2426
      %v2428 = vrot.slane %v2427, 1
      %v2429 = vadd.f32 %v2427, %v2428
      %s2430 = vtos %v2429
      %v2431 = vstv %s2430
      %v2432 = vld [vmem:[#allocation2] sm:$0x1]
      %v2433 = vadd.f32 %v2431, %v2432
      %v2434 = vsub.f32 0.0, %v2433
      %v2435 = vmul.f32 %v2434, 1.442695
      %v2436 = vpow.pop %v2435
      %v2437 = vadd.f32 %v2436, 1.0
      %v2438 = vrcp.pop %v2437
      %v2439 = vmul.f32 1.0, %v2438
      %v2440 = vmul.f32 %v2433, 1.442695
      %v2441 = vpow.pop %v2440
      %v2442 = vadd.f32 %v2441, 1.0
      %v2443 = vrcp.pop %v2442
      %v2444 = vmul.f32 %v2441, %v2443
      %vm2445 = vcmp.ge.f32.partialorder %v2433, 0.0
      %v2446 = vsel %vm2445, %v2439, %v2444
      %v2448 = vlaneseq
      %v2449 = vshrl.u32 %v2448, 7
      %v2450 = vsub.s32 0, %v2449
      %v2451 = vrot.slane %v2446, %v2450
      %2452 = vset.pattern.permute.xlu0 0
      %2453 = vperm.xlu0 %2452, %v2451
      %v2454 = vpop.permute.xlu0 %2453
      %2456 = vst [vmem:[%s388] sm:$0xff] %v2454
      %p2457 = scmp.lt.s32.totalorder %s24, 1
      %s2458 = scalar_select %p2457, %s24, 1
      %s2459 = smul.addr %s2458, 8
      %s2460 = scalar_lea.vmem %s11, %s2459
      // Predicated region
      $region65: #{backup_gan_forward.1} parent=63 // pred_check
        %p2461 = pneg %p278
      $region66: #{backup_gan_forward.1} parent=63 // pred_check_branch
        %2463 = sbr.rel (%p2461) target = $region68
      $region67: #{backup_gan_forward.1} parent=63 // pred_region
        _
      $region68: #{backup_gan_forward.1} parent=63 // pred_fallthru
        _
    $region64: #{backup_gan_forward.1} parent=5 // pred_fallthru
      _
    %p2464 = scmp.le.s32.totalorder 2, %s19
    // Predicated region
    $region69: #{backup_gan_forward.1} parent=5 // pred_check
      %p2465 = pneg %p2464
    $region70: #{backup_gan_forward.1} parent=5 // pred_check_branch
      %2467 = sbr.rel (%p2465) target = $region72
    $region71: #{backup_gan_forward.1} parent=5 // pred_region
      %s2468 = ssub.s32 %s19, 2
      // Predicated region
      $region73: #{backup_gan_forward.1} parent=71 // pred_check
        %p2469 = pneg %p284
      $region74: #{backup_gan_forward.1} parent=71 // pred_check_branch
        %2471 = sbr.rel (%p2469) target = $region76
      $region75: #{backup_gan_forward.1} parent=71 // pred_region
        %p2472 = scmp.lt.s32.totalorder %s25, 1
        %s2473 = scalar_select %p2472, %s25, 1
        %s2474 = smul.addr %s2473, 8
        %s2475 = scalar_lea.vmem %s11, %s2474
      $region76: #{backup_gan_forward.1} parent=71 // pred_fallthru
        _
    $region72: #{backup_gan_forward.1} parent=5 // pred_fallthru
      _
  $region6: #{backup_gan_forward.1} parent=0 // loop_footer
    %s23 = sadd.s32 1, %s19
  $region7: #{backup_gan_forward.1} parent=0 // loop_footer_branch
    %18 = sbr.rel target = $region3
  $region8: #{backup_gan_forward.1} parent=0 // loop_exit
    _

</llo_original>
